<compile_context>
chip_gen: v7x
topology: tpu7x:2x2x1
jax: 0.10.0
libtpu: 0.0.40
codegen_flags: <defaults>
</compile_context>

<pallas_src>
import functools

import numpy as np
import jax
import jax.numpy as jnp
from jax.experimental import pallas as pl
from jax.experimental.pallas import tpu as pltpu


# ------------------------------- helpers ----------------------------------- #

def _round_up(x, m):
    return ((x + m - 1) // m) * m


# ----------------------------- Pallas kernel ------------------------------- #

def _conv_taps_kernel(x_ref, w_ref, b_ref, o_ref, *, h_taps, p_taps, w_taps,
                      oh, ow_pad, act, negative_slope):
    """One (batch image, Cout tile): fused-im2col conv + bias + activation.

    x_ref : (1, H2, P, W2, K)  bf16 -- zero-padded input; for stride-2 layers
            the W-parity is folded into K and the H-parity is dim P.
    w_ref : (h_taps*p_taps*w_taps, K, tn) bf16
    b_ref : (1, tn) f32
    o_ref : (1, oh*ow_pad, tn)
    """
    m = oh * ow_pad
    k = x_ref.shape[-1]
    tn = o_ref.shape[-1]

    acc = jnp.zeros((m, tn), jnp.float32)
    t = 0
    for a in range(h_taps):              # shifted-window taps, fully unrolled
        for bh in range(p_taps):
            for c in range(w_taps):
                win = x_ref[0, a:a + oh, bh, c:c + ow_pad, :]
                # ow_pad % 16 == 0 -> this flatten is layout-preserving.
                win = win.reshape(m, k)
                acc = acc + jnp.dot(win, w_ref[t],
                                    preferred_element_type=jnp.float32)
                t += 1

    acc = acc + b_ref[...]                                   # (1, tn) broadcast
    if act == "lrelu":
        acc = jnp.where(acc >= 0.0, acc, negative_slope * acc)
    elif act == "sigmoid":
        # Overflow-safe sigmoid; exp and approx reciprocal both run on the EUP.
        z = jnp.exp(-jnp.abs(acc))
        acc = jnp.where(acc >= 0.0, 1.0, z) * pl.reciprocal(1.0 + z, approx=True)
    o_ref[0] = acc.astype(o_ref.dtype)


# ------------------------- conv layer via Pallas ---------------------------- #

def conv2d_pallas(x, w, b, *, stride, pad, act, negative_slope=0.2,
                  out_dtype=jnp.bfloat16):
    """Conv2d on an NHWC activation with fused bias + activation.

    x : (N, H, W, C) -- C may carry trailing zero-padded channels (C >= w Cin).
    w : (Cout, Cin, KH, KW) f32 (PyTorch OIHW layout).
    b : (Cout,) f32.
    Returns (N, OH, OW, Cout_pad) with Cout_pad = round_up(Cout, 128); channels
    [Cout:] are exactly zero (safe to feed into the next layer).
    """
    N, H, W, C = x.shape
    Cout, Cin_w, KH, KW = w.shape
    assert Cin_w <= C and stride in (1, 2)

    OH = (H + 2 * pad - KH) // stride + 1
    OW = (W + 2 * pad - KW) // stride + 1
    OW_pad = _round_up(OW, 16)            # free in-kernel flatten + aligned stores
    Cout_pad = _round_up(Cout, 128)       # lane-dense output / MXU N dim

    xb = x.astype(jnp.bfloat16)
    # OIHW -> HWIO; zero-pad Cin to the activation channel count and Cout to 128.
    w_hwio = jnp.transpose(w, (2, 3, 1, 0)).astype(jnp.bfloat16)
    w_hwio = jnp.pad(w_hwio, ((0, 0), (0, 0), (0, C - Cin_w), (0, Cout_pad - Cout)))
    b_pad = jnp.pad(b.astype(jnp.float32), (0, Cout_pad - Cout)).reshape(1, Cout_pad)

    if stride == 2:
        assert KH == 4 and KW == 4
        # Fold the stride into the layout with pure reshapes (no HBM movement):
        #   x5[n, i, bh, j, bw*C + ci] = xpad[n, 2i+bh, 2j+bw, ci]
        # so the strided 4x4 conv becomes a stride-1 conv with taps (a, bh, c)
        # and contraction over (bw, ci): windows are contiguous slices.
        HP = _round_up(H + 2 * pad, 2)
        WP = max(_round_up(W + 2 * pad, 2), 2 * (OW_pad + 1))
        xp = jnp.pad(xb, ((0, 0), (pad, HP - H - pad), (pad, WP - W - pad), (0, 0)))
        H2, P, W2, K = HP // 2, 2, WP // 2, 2 * C
        x_in = xp.reshape(N, H2, 2, W2, K)
        kh_taps, ph_taps, kw_taps = 2, 2, 2
        # (kh,kw,ci,co) -> (a,bh,c,bw,ci,co) -> ((a,bh,c), (bw,ci), co)
        w_flat = w_hwio.reshape(2, 2, 2, 2, C, Cout_pad).reshape(8, K, Cout_pad)
    else:
        HP = H + 2 * pad
        WP = max(W + 2 * pad, OW_pad + KW - 1)
        xp = jnp.pad(xb, ((0, 0), (pad, pad), (pad, WP - W - pad), (0, 0)))
        H2, P, W2, K = HP, 1, WP, C
        x_in = xp.reshape(N, H2, 1, W2, K)
        kh_taps, ph_taps, kw_taps = KH, 1, KW
        w_flat = w_hwio.reshape(KH * KW, C, Cout_pad)

    taps = kh_taps * ph_taps * kw_taps
    M_blk = OH * OW_pad
    tn = next(c for c in (512, 256, 128) if Cout_pad % c == 0)   # widest divisor
    gn = Cout_pad // tn

    # VMEM budget from the actual per-step footprint (+ kernel temporaries).
    out_isz = jnp.dtype(out_dtype).itemsize
    x_blk = H2 * P * W2 * K * 2
    w_blk = taps * K * tn * 2
    o_blk = M_blk * tn * out_isz
    tmp = M_blk * tn * 4 + (taps + 2) * M_blk * K * 2            # acc + windows
    vmem_bytes = int(min(2 * (x_blk + w_blk + o_blk + tn * 4) + tmp + (8 << 20),
                         100 << 20))

    cost = pl.CostEstimate(
        flops=2 * N * taps * M_blk * K * Cout_pad,
        transcendentals=(N * M_blk * Cout_pad) if act == "sigmoid" else 0,
        bytes_accessed=(N * gn * (x_blk + w_blk)
                        + N * M_blk * Cout_pad * out_isz))

    kernel = functools.partial(
        _conv_taps_kernel, h_taps=kh_taps, p_taps=ph_taps, w_taps=kw_taps,
        oh=OH, ow_pad=OW_pad, act=act, negative_slope=negative_slope)

    out = pl.pallas_call(
        kernel,
        out_shape=jax.ShapeDtypeStruct((N, M_blk, Cout_pad), out_dtype),
        grid=(N, gn),
        in_specs=[
            pl.BlockSpec((1, H2, P, W2, K), lambda bi, j: (bi, 0, 0, 0, 0)),
            pl.BlockSpec((taps, K, tn), lambda bi, j: (0, 0, j)),
            pl.BlockSpec((1, tn), lambda bi, j: (0, j)),
        ],
        out_specs=pl.BlockSpec((1, M_blk, tn), lambda bi, j: (bi, 0, j)),
        compiler_params=pltpu.CompilerParams(
            dimension_semantics=("parallel", "parallel"),
            vmem_limit_bytes=vmem_bytes),
        cost_estimate=cost,
    )(x_in, w_flat, b_pad)

    out = out.reshape(N, OH, OW_pad, Cout_pad)[:, :, :OW, :]
    return out                                                  # NHWC, Cout padded


# --------------------------- model construction ---------------------------- #

def build_layer_sizes(input_nc, ndf, n_layers):
    """(Cin, Cout, stride) per conv layer, mirroring NLayerDiscriminator.__init__."""
    layers = [(input_nc, ndf, 2)]
    nf_mult = 1
    for n in range(1, n_layers):
        nf_mult_prev = nf_mult
        nf_mult = min(2 ** n, 8)
        layers.append((ndf * nf_mult_prev, ndf * nf_mult, 2))
    nf_mult_prev = nf_mult
    nf_mult = min(2 ** n_layers, 8)
    layers.append((ndf * nf_mult_prev, ndf * nf_mult, 2))
    layers.append((ndf * nf_mult, 1, 1))   # final 1-channel conv, stride 1
    return layers


def init_params(key, input_nc, ndf, n_layers, kw=4):
    """Deterministic PyTorch-default-style (uniform +-1/sqrt(fan_in)) init."""
    params = []
    for (cin, cout, s) in build_layer_sizes(input_nc, ndf, n_layers):
        key, k1, k2 = jax.random.split(key, 3)
        bound = 1.0 / np.sqrt(cin * kw * kw)
        wgt = jax.random.uniform(k1, (cout, cin, kw, kw), jnp.float32, -bound, bound)
        bias = jax.random.uniform(k2, (cout,), jnp.float32, -bound, bound)
        params.append((wgt, bias, s))
    return params


def nlayer_discriminator_pallas(x_nchw, params, *, use_sigmoid=False, kw=4):
    padw = int(np.ceil((kw - 1) / 2))   # = 2
    x = jnp.transpose(x_nchw, (0, 2, 3, 1))        # NCHW -> NHWC once
    n = len(params)
    for i, (wgt, bias, s) in enumerate(params):
        last = (i == n - 1)
        act = "lrelu" if not last else ("sigmoid" if use_sigmoid else "none")
        out_dtype = jnp.float32 if last else jnp.bfloat16
        x = conv2d_pallas(x, wgt, bias, stride=s, pad=padw, act=act,
                          out_dtype=out_dtype)
    cout_last = params[-1][0].shape[0]
    x = x[..., :cout_last]                          # strip channel padding
    return jnp.transpose(x, (0, 3, 1, 2))           # back to NCHW for the output


# ------------------------------- references -------------------------------- #

def nlayer_discriminator_ref(x, params, *, use_sigmoid=False, kw=4,
                             quantized=False):
    """Pure-JAX reference (lax.conv).

    quantized=True matches the kernel's numerics (bf16 operands, f32
    accumulation, bf16 intermediate activations); quantized=False is the
    plain f32 PyTorch-equivalent forward.
    """
    padw = int(np.ceil((kw - 1) / 2))
    n = len(params)
    for i, (wgt, bias, s) in enumerate(params):
        last = (i == n - 1)
        if quantized:
            xin, win = x.astype(jnp.bfloat16), wgt.astype(jnp.bfloat16)
        else:
            xin, win = x, wgt
        y = jax.lax.conv_general_dilated(
            xin, win, window_strides=(s, s),
            padding=[(padw, padw), (padw, padw)],
            dimension_numbers=("NCHW", "OIHW", "NCHW"),
            preferred_element_type=jnp.float32)
        y = y + bias[None, :, None, None].astype(jnp.float32)
        if not last:
            y = jnp.where(y >= 0.0, y, 0.2 * y)
        elif use_sigmoid:
            y = jax.nn.sigmoid(y)
        x = y.astype(jnp.bfloat16) if (quantized and not last) else y
    return x.astype(jnp.float32)


# ---------------------------------- main ----------------------------------- #

if __name__ == "__main__":
    # Small shapes consistent with the module: batch=2, input_nc=4, 16x16 images,
    # ndf=8 (scaled-down from 64), n_layers=3.
    batch, input_nc, spatial = 2, 4, 16
    ndf, n_layers = 8, 3

    key = jax.random.PRNGKey(0)
    k_x, k_p = jax.random.split(key)
    x = jax.random.normal(k_x, (batch, input_nc, spatial, spatial), jnp.float32)
    params = init_params(k_p, input_nc, ndf, n_layers)

    out = jax.block_until_ready(
        nlayer_discriminator_pallas(x, params, use_sigmoid=False))

    # Tight check vs a quantization-matched lax.conv reference (bf16 operands,
    # f32 accumulation) -- only the summation order differs.
    ref_q = jax.block_until_ready(
        nlayer_discriminator_ref(x, params, use_sigmoid=False, quantized=True))
    assert out.shape == ref_q.shape, (out.shape, ref_q.shape)
    np.testing.assert_allclose(np.asarray(out, np.float32),
                               np.asarray(ref_q, np.float32),
                               rtol=2e-3, atol=2e-3)

    # Loose check vs the pure-f32 reference (bf16 operand-rounding budget).
    ref_f = jax.block_until_ready(
        nlayer_discriminator_ref(x, params, use_sigmoid=False, quantized=False))
    np.testing.assert_allclose(np.asarray(out, np.float32),
                               np.asarray(ref_f, np.float32),
                               rtol=5e-2, atol=5e-2)

    # Exercise the fused in-kernel sigmoid path (approx EUP reciprocal -> slightly
    # looser tolerance).
    out_s = jax.block_until_ready(
        nlayer_discriminator_pallas(x, params, use_sigmoid=True))
    ref_s = jax.block_until_ready(
        nlayer_discriminator_ref(x, params, use_sigmoid=True, quantized=True))
    np.testing.assert_allclose(np.asarray(out_s, np.float32),
                               np.asarray(ref_s, np.float32),
                               rtol=5e-3, atol=5e-3)

    print("KERNEL_OK")
</pallas_src>

<mosaic_0001>
module attributes {stable_mosaic.version = 11 : i64} {
  func.func @_conv_taps_kernel(%arg0: i32, %arg1: i32, %arg2: memref<1x10x2x17x8xbf16, #tpu.memory_space<vmem>>, %arg3: memref<8x8x128xbf16, #tpu.memory_space<vmem>>, %arg4: memref<1x128xf32, #tpu.memory_space<vmem>>, %arg5: memref<1x144x128xbf16, #tpu.memory_space<vmem>>) attributes {dimension_semantics = [#tpu.dimension_semantics<parallel>, #tpu.dimension_semantics<parallel>], iteration_bounds = array<i64: 2, 1>, scalar_prefetch = 0 : i64, scratch_operands = 0 : i64, tpu.core_type = #tpu.core_type<tc>, window_params = [{transform_indices = @transform_0, window_bounds = array<i64: 1, 10, 2, 17, 8>}, {transform_indices = @transform_1, window_bounds = array<i64: 8, 8, 128>}, {transform_indices = @transform_2, window_bounds = array<i64: 1, 128>}, {transform_indices = @transform_3, window_bounds = array<i64: 1, 144, 128>}]} {
    %cst = arith.constant 0.000000e+00 : f32
    %0 = vector.broadcast %cst : f32 to vector<144x128xf32>
    %c0 = arith.constant 0 : index
    %c0_0 = arith.constant 0 : index
    %c0_1 = arith.constant 0 : index
    %c0_2 = arith.constant 0 : index
    %c0_3 = arith.constant 0 : index
    %1 = vector.load %arg2[%c0, %c0_0, %c0_1, %c0_2, %c0_3] : memref<1x10x2x17x8xbf16, #tpu.memory_space<vmem>>, vector<1x9x1x16x8xbf16>
    %2 = vector.shape_cast %1 : vector<1x9x1x16x8xbf16> to vector<9x16x8xbf16>
    %3 = vector.shape_cast %2 : vector<9x16x8xbf16> to vector<144x8xbf16>
    %c0_4 = arith.constant 0 : index
    %c0_5 = arith.constant 0 : index
    %c0_6 = arith.constant 0 : index
    %4 = vector.load %arg3[%c0_4, %c0_5, %c0_6] : memref<8x8x128xbf16, #tpu.memory_space<vmem>>, vector<1x8x128xbf16>
    %5 = vector.shape_cast %4 : vector<1x8x128xbf16> to vector<8x128xbf16>
    %cst_7 = arith.constant dense<0.000000e+00> : vector<144x128xf32>
    %6 = tpu.matmul %3, %5, %cst_7 {dimension_numbers = #tpu.dot_dimension_numbers<[1], [0], [0], [1], [0, 0, 1, 1], [], []>} : vector<144x8xbf16>, vector<8x128xbf16>, vector<144x128xf32> -> vector<144x128xf32>
    %7 = arith.addf %0, %6 : vector<144x128xf32>
    %c0_8 = arith.constant 0 : index
    %c0_9 = arith.constant 0 : index
    %c0_10 = arith.constant 0 : index
    %c1 = arith.constant 1 : index
    %c0_11 = arith.constant 0 : index
    %8 = vector.load %arg2[%c0_8, %c0_9, %c0_10, %c1, %c0_11] : memref<1x10x2x17x8xbf16, #tpu.memory_space<vmem>>, vector<1x9x1x16x8xbf16>
    %9 = vector.shape_cast %8 : vector<1x9x1x16x8xbf16> to vector<9x16x8xbf16>
    %10 = vector.shape_cast %9 : vector<9x16x8xbf16> to vector<144x8xbf16>
    %c1_12 = arith.constant 1 : index
    %c0_13 = arith.constant 0 : index
    %c0_14 = arith.constant 0 : index
    %11 = vector.load %arg3[%c1_12, %c0_13, %c0_14] : memref<8x8x128xbf16, #tpu.memory_space<vmem>>, vector<1x8x128xbf16>
    %12 = vector.shape_cast %11 : vector<1x8x128xbf16> to vector<8x128xbf16>
    %cst_15 = arith.constant dense<0.000000e+00> : vector<144x128xf32>
    %13 = tpu.matmul %10, %12, %cst_15 {dimension_numbers = #tpu.dot_dimension_numbers<[1], [0], [0], [1], [0, 0, 1, 1], [], []>} : vector<144x8xbf16>, vector<8x128xbf16>, vector<144x128xf32> -> vector<144x128xf32>
    %14 = arith.addf %7, %13 : vector<144x128xf32>
    %c0_16 = arith.constant 0 : index
    %c0_17 = arith.constant 0 : index
    %c1_18 = arith.constant 1 : index
    %c0_19 = arith.constant 0 : index
    %c0_20 = arith.constant 0 : index
    %15 = vector.load %arg2[%c0_16, %c0_17, %c1_18, %c0_19, %c0_20] : memref<1x10x2x17x8xbf16, #tpu.memory_space<vmem>>, vector<1x9x1x16x8xbf16>
    %16 = vector.shape_cast %15 : vector<1x9x1x16x8xbf16> to vector<9x16x8xbf16>
    %17 = vector.shape_cast %16 : vector<9x16x8xbf16> to vector<144x8xbf16>
    %c2 = arith.constant 2 : index
    %c0_21 = arith.constant 0 : index
    %c0_22 = arith.constant 0 : index
    %18 = vector.load %arg3[%c2, %c0_21, %c0_22] : memref<8x8x128xbf16, #tpu.memory_space<vmem>>, vector<1x8x128xbf16>
    %19 = vector.shape_cast %18 : vector<1x8x128xbf16> to vector<8x128xbf16>
    %cst_23 = arith.constant dense<0.000000e+00> : vector<144x128xf32>
    %20 = tpu.matmul %17, %19, %cst_23 {dimension_numbers = #tpu.dot_dimension_numbers<[1], [0], [0], [1], [0, 0, 1, 1], [], []>} : vector<144x8xbf16>, vector<8x128xbf16>, vector<144x128xf32> -> vector<144x128xf32>
    %21 = arith.addf %14, %20 : vector<144x128xf32>
    %c0_24 = arith.constant 0 : index
    %c0_25 = arith.constant 0 : index
    %c1_26 = arith.constant 1 : index
    %c1_27 = arith.constant 1 : index
    %c0_28 = arith.constant 0 : index
    %22 = vector.load %arg2[%c0_24, %c0_25, %c1_26, %c1_27, %c0_28] : memref<1x10x2x17x8xbf16, #tpu.memory_space<vmem>>, vector<1x9x1x16x8xbf16>
    %23 = vector.shape_cast %22 : vector<1x9x1x16x8xbf16> to vector<9x16x8xbf16>
    %24 = vector.shape_cast %23 : vector<9x16x8xbf16> to vector<144x8xbf16>
    %c3 = arith.constant 3 : index
    %c0_29 = arith.constant 0 : index
    %c0_30 = arith.constant 0 : index
    %25 = vector.load %arg3[%c3, %c0_29, %c0_30] : memref<8x8x128xbf16, #tpu.memory_space<vmem>>, vector<1x8x128xbf16>
    %26 = vector.shape_cast %25 : vector<1x8x128xbf16> to vector<8x128xbf16>
    %cst_31 = arith.constant dense<0.000000e+00> : vector<144x128xf32>
    %27 = tpu.matmul %24, %26, %cst_31 {dimension_numbers = #tpu.dot_dimension_numbers<[1], [0], [0], [1], [0, 0, 1, 1], [], []>} : vector<144x8xbf16>, vector<8x128xbf16>, vector<144x128xf32> -> vector<144x128xf32>
    %28 = arith.addf %21, %27 : vector<144x128xf32>
    %c0_32 = arith.constant 0 : index
    %c1_33 = arith.constant 1 : index
    %c0_34 = arith.constant 0 : index
    %c0_35 = arith.constant 0 : index
    %c0_36 = arith.constant 0 : index
    %29 = vector.load %arg2[%c0_32, %c1_33, %c0_34, %c0_35, %c0_36] : memref<1x10x2x17x8xbf16, #tpu.memory_space<vmem>>, vector<1x9x1x16x8xbf16>
    %30 = vector.shape_cast %29 : vector<1x9x1x16x8xbf16> to vector<9x16x8xbf16>
    %31 = vector.shape_cast %30 : vector<9x16x8xbf16> to vector<144x8xbf16>
    %c4 = arith.constant 4 : index
    %c0_37 = arith.constant 0 : index
    %c0_38 = arith.constant 0 : index
    %32 = vector.load %arg3[%c4, %c0_37, %c0_38] : memref<8x8x128xbf16, #tpu.memory_space<vmem>>, vector<1x8x128xbf16>
    %33 = vector.shape_cast %32 : vector<1x8x128xbf16> to vector<8x128xbf16>
    %cst_39 = arith.constant dense<0.000000e+00> : vector<144x128xf32>
    %34 = tpu.matmul %31, %33, %cst_39 {dimension_numbers = #tpu.dot_dimension_numbers<[1], [0], [0], [1], [0, 0, 1, 1], [], []>} : vector<144x8xbf16>, vector<8x128xbf16>, vector<144x128xf32> -> vector<144x128xf32>
    %35 = arith.addf %28, %34 : vector<144x128xf32>
    %c0_40 = arith.constant 0 : index
    %c1_41 = arith.constant 1 : index
    %c0_42 = arith.constant 0 : index
    %c1_43 = arith.constant 1 : index
    %c0_44 = arith.constant 0 : index
    %36 = vector.load %arg2[%c0_40, %c1_41, %c0_42, %c1_43, %c0_44] : memref<1x10x2x17x8xbf16, #tpu.memory_space<vmem>>, vector<1x9x1x16x8xbf16>
    %37 = vector.shape_cast %36 : vector<1x9x1x16x8xbf16> to vector<9x16x8xbf16>
    %38 = vector.shape_cast %37 : vector<9x16x8xbf16> to vector<144x8xbf16>
    %c5 = arith.constant 5 : index
    %c0_45 = arith.constant 0 : index
    %c0_46 = arith.constant 0 : index
    %39 = vector.load %arg3[%c5, %c0_45, %c0_46] : memref<8x8x128xbf16, #tpu.memory_space<vmem>>, vector<1x8x128xbf16>
    %40 = vector.shape_cast %39 : vector<1x8x128xbf16> to vector<8x128xbf16>
    %cst_47 = arith.constant dense<0.000000e+00> : vector<144x128xf32>
    %41 = tpu.matmul %38, %40, %cst_47 {dimension_numbers = #tpu.dot_dimension_numbers<[1], [0], [0], [1], [0, 0, 1, 1], [], []>} : vector<144x8xbf16>, vector<8x128xbf16>, vector<144x128xf32> -> vector<144x128xf32>
    %42 = arith.addf %35, %41 : vector<144x128xf32>
    %c0_48 = arith.constant 0 : index
    %c1_49 = arith.constant 1 : index
    %c1_50 = arith.constant 1 : index
    %c0_51 = arith.constant 0 : index
    %c0_52 = arith.constant 0 : index
    %43 = vector.load %arg2[%c0_48, %c1_49, %c1_50, %c0_51, %c0_52] : memref<1x10x2x17x8xbf16, #tpu.memory_space<vmem>>, vector<1x9x1x16x8xbf16>
    %44 = vector.shape_cast %43 : vector<1x9x1x16x8xbf16> to vector<9x16x8xbf16>
    %45 = vector.shape_cast %44 : vector<9x16x8xbf16> to vector<144x8xbf16>
    %c6 = arith.constant 6 : index
    %c0_53 = arith.constant 0 : index
    %c0_54 = arith.constant 0 : index
    %46 = vector.load %arg3[%c6, %c0_53, %c0_54] : memref<8x8x128xbf16, #tpu.memory_space<vmem>>, vector<1x8x128xbf16>
    %47 = vector.shape_cast %46 : vector<1x8x128xbf16> to vector<8x128xbf16>
    %cst_55 = arith.constant dense<0.000000e+00> : vector<144x128xf32>
    %48 = tpu.matmul %45, %47, %cst_55 {dimension_numbers = #tpu.dot_dimension_numbers<[1], [0], [0], [1], [0, 0, 1, 1], [], []>} : vector<144x8xbf16>, vector<8x128xbf16>, vector<144x128xf32> -> vector<144x128xf32>
    %49 = arith.addf %42, %48 : vector<144x128xf32>
    %c0_56 = arith.constant 0 : index
    %c1_57 = arith.constant 1 : index
    %c1_58 = arith.constant 1 : index
    %c1_59 = arith.constant 1 : index
    %c0_60 = arith.constant 0 : index
    %50 = vector.load %arg2[%c0_56, %c1_57, %c1_58, %c1_59, %c0_60] : memref<1x10x2x17x8xbf16, #tpu.memory_space<vmem>>, vector<1x9x1x16x8xbf16>
    %51 = vector.shape_cast %50 : vector<1x9x1x16x8xbf16> to vector<9x16x8xbf16>
    %52 = vector.shape_cast %51 : vector<9x16x8xbf16> to vector<144x8xbf16>
    %c7 = arith.constant 7 : index
    %c0_61 = arith.constant 0 : index
    %c0_62 = arith.constant 0 : index
    %53 = vector.load %arg3[%c7, %c0_61, %c0_62] : memref<8x8x128xbf16, #tpu.memory_space<vmem>>, vector<1x8x128xbf16>
    %54 = vector.shape_cast %53 : vector<1x8x128xbf16> to vector<8x128xbf16>
    %cst_63 = arith.constant dense<0.000000e+00> : vector<144x128xf32>
    %55 = tpu.matmul %52, %54, %cst_63 {dimension_numbers = #tpu.dot_dimension_numbers<[1], [0], [0], [1], [0, 0, 1, 1], [], []>} : vector<144x8xbf16>, vector<8x128xbf16>, vector<144x128xf32> -> vector<144x128xf32>
    %56 = arith.addf %49, %55 : vector<144x128xf32>
    %c0_64 = arith.constant 0 : index
    %c0_65 = arith.constant 0 : index
    %57 = vector.load %arg4[%c0_64, %c0_65] : memref<1x128xf32, #tpu.memory_space<vmem>>, vector<1x128xf32>
    %58 = vector.broadcast %57 : vector<1x128xf32> to vector<144x128xf32>
    %59 = arith.addf %56, %58 : vector<144x128xf32>
    %cst_66 = arith.constant 0.000000e+00 : f32
    %60 = vector.broadcast %cst_66 : f32 to vector<144x128xf32>
    %61 = arith.cmpf oge, %59, %60 : vector<144x128xf32>
    %cst_67 = arith.constant 2.000000e-01 : f32
    %62 = vector.broadcast %cst_67 : f32 to vector<144x128xf32>
    %63 = arith.mulf %62, %59 : vector<144x128xf32>
    %64 = arith.select %61, %59, %63 : vector<144x128xi1>, vector<144x128xf32>
    %65 = arith.truncf %64 : vector<144x128xf32> to vector<144x128xbf16>
    %c0_68 = arith.constant 0 : index
    %c0_69 = arith.constant 0 : index
    %c0_70 = arith.constant 0 : index
    %66 = vector.load %arg5[%c0_68, %c0_69, %c0_70] : memref<1x144x128xbf16, #tpu.memory_space<vmem>>, vector<1x144x128xbf16>
    %67 = vector.shape_cast %66 : vector<1x144x128xbf16> to vector<144x128xbf16>
    %68 = vector.shape_cast %65 : vector<144x128xbf16> to vector<1x144x128xbf16>
    tpu.vector_store %arg5[%c0_68, %c0_69, %c0_70], %68 {strides = array<i32>} : memref<1x144x128xbf16, #tpu.memory_space<vmem>>, vector<1x144x128xbf16>,
    return
  }
  func.func @transform_0(%arg0: i32, %arg1: i32) -> (i32, i32, i32, i32, i32) {
    %c0_i32 = arith.constant 0 : i32
    %c0_i32_0 = arith.constant 0 : i32
    %c0_i32_1 = arith.constant 0 : i32
    %c0_i32_2 = arith.constant 0 : i32
    %c0_i32_3 = arith.constant 0 : i32
    return %arg0, %c0_i32, %c0_i32_0, %c0_i32_1, %c0_i32_2 : i32, i32, i32, i32, i32
  }
  func.func @transform_1(%arg0: i32, %arg1: i32) -> (i32, i32, i32) {
    %c0_i32 = arith.constant 0 : i32
    %c0_i32_0 = arith.constant 0 : i32
    %c0_i32_1 = arith.constant 0 : i32
    return %c0_i32, %c0_i32_0, %arg1 : i32, i32, i32
  }
  func.func @transform_2(%arg0: i32, %arg1: i32) -> (i32, i32) {
    %c0_i32 = arith.constant 0 : i32
    %c0_i32_0 = arith.constant 0 : i32
    return %c0_i32, %arg1 : i32, i32
  }
  func.func @transform_3(%arg0: i32, %arg1: i32) -> (i32, i32, i32) {
    %c0_i32 = arith.constant 0 : i32
    %c0_i32_0 = arith.constant 0 : i32
    return %arg0, %c0_i32, %arg1 : i32, i32, i32
  }
}

</mosaic_0001>

<llo_original>
// kernel: tpu_custom_call.1
$region0: #{tpu_custom_call.1}
  #allocation0 [shape = 'u32[]', space=smem, size = 0x4, offset = 0x4, fixed_abs, tag = 'smem constant byte address 0x4 - core index']
  #allocation1 [shape = 'u32[144,128]{1,0:T(1,128)}', space=vmem, size = 0x12000, scoped, tag = 'internal scratch']
  %s0 = inlined_call_operand.vmem [shape: bf16[2,10,2,17,8], index: 0, kind: input, shape index: {}]
  %s1 = inlined_call_operand.vmem [shape: bf16[8,8,128], index: 1, kind: input, shape index: {}]
  %s2 = inlined_call_operand.vmem [shape: f32[1,128], index: 2, kind: input, shape index: {}]
  %s3 = inlined_call_operand.hbm [shape: bf16[2,144,128], index: 3, kind: output, shape index: {}]
  %s4 = sld [smem:[#allocation0]]
  $region45: #{tpu_custom_call.1} parent=0
    _
  %s6 = ssub.s32 1, %s4
  %s7 = scalar_select 0, %s6, %s4
  $region1: #{tpu_custom_call.1} parent=0
    #allocation2 [shape = 'u8[73728]{0}', space=vmem, size = 0x12000, scoped, tag = 'output window, operand 0']
    #allocation3 [shape = 's32[2]{0}', space=sflag, size = 0x8, scoped, tag = 'scoped memory for tpu_custom_call.1']
    %8 = vsyncpa [#allocation3], 0
    %s9 = scalar_lea.sflag [#allocation3], 1
    %10 = vsyncpa %s9, 0
    loop: start=0, step=1, limit=4
    $region2: #{tpu_custom_call.1} parent=1 // loop_pre_header
      _
    $region3: #{tpu_custom_call.1} parent=1 // loop_header
      %s12 = sphi 0, %s16
      %p13 = scmp.ge.s32.totalorder %s12, 4
      %s19 = sphi 0, %s31
      %s20 = sphi 0, %s27
      %s21 = sphi 0, %s19
      %s22 = sphi 0, %s20
      %s23 = sphi 0, %s21
      %s24 = sphi 0, %s22
      %s34 = sphi 0, %s36
      %s37 = sphi 0, %s34
      %s38 = sphi 0, %s37
      %s54 = sphi 0, %s38
      %s60 = sphi 0, %s62
      %s63 = sphi 0, %s60
      %s64 = sphi 0, %s63
      %s80 = sphi 0, %s64
      %s86 = sphi 0, %s88
      %s89 = sphi 0, %s86
      %s90 = sphi 0, %s89
      %s106 = sphi 0, %s90
      %s114 = sphi 0, %s116
      %s117 = sphi 0, %s114
      %s118 = sphi 0, %s117
      %s134 = sphi 0, %s118
    $region4: #{tpu_custom_call.1} parent=1 // loop_header_branch
      %15 = sbr.rel (%p13) target = $region8
    $region5: #{tpu_custom_call.1} parent=1 // loop_body
      %s17 = ssub.s32 %s12, 1
      %s18 = ssub.s32 %s12, 2
      %s25 = sadd.s32 1, %s20
      %p26 = scmp.ge.s32.totalorder %s25, 1
      %s27 = scalar_select %p26, 0, %s25
      %s28 = sadd.s32 1, %s19
      %s29 = scalar_select %p26, %s28, %s19
      %p30 = scmp.ge.s32.totalorder %s29, 2
      %s31 = scalar_select %p30, 0, %s29
      %s32 = ssub.s32 %s19, %s31
      %p33 = scmp.eq.s32.totalorder %s32, 0
      %s35 = sadd.s32 %s34, 1
      %s36 = scalar_select %p33, %s34, %s35
      %p39 = pneg %p33
      %p40 = scmp.eq.s32.totalorder %s12, 1
      %p41 = por %p39, %p40
      %p42 = scmp.ne.s32.totalorder %s34, %s37
      %p43 = scmp.eq.s32.totalorder %s12, 0
      %p44 = por %p42, %p43
      %p45 = scmp.ne.s32.totalorder %s34, %s37
      %p46 = scmp.eq.s32.totalorder %s17, 1
      %p47 = por %p45, %p46
      %p48 = scmp.ne.s32.totalorder %s37, %s38
      %p49 = scmp.eq.s32.totalorder %s17, 0
      %p50 = por %p48, %p49
      %p51 = scmp.ne.s32.totalorder %s37, %s38
      %p52 = scmp.eq.s32.totalorder %s18, 1
      %p53 = por %p51, %p52
      %p55 = scmp.ne.s32.totalorder %s38, %s54
      %p56 = scmp.eq.s32.totalorder %s18, 0
      %p57 = por %p55, %p56
      %s58 = ssub.s32 %s20, %s27
      %p59 = scmp.eq.s32.totalorder %s58, 0
      %s61 = sadd.s32 %s60, 1
      %s62 = scalar_select %p59, %s60, %s61
      %p65 = pneg %p59
      %p66 = scmp.eq.s32.totalorder %s12, 1
      %p67 = por %p65, %p66
      %p68 = scmp.ne.s32.totalorder %s60, %s63
      %p69 = scmp.eq.s32.totalorder %s12, 0
      %p70 = por %p68, %p69
      %p71 = scmp.ne.s32.totalorder %s60, %s63
      %p72 = scmp.eq.s32.totalorder %s17, 1
      %p73 = por %p71, %p72
      %p74 = scmp.ne.s32.totalorder %s63, %s64
      %p75 = scmp.eq.s32.totalorder %s17, 0
      %p76 = por %p74, %p75
      %p77 = scmp.ne.s32.totalorder %s63, %s64
      %p78 = scmp.eq.s32.totalorder %s18, 1
      %p79 = por %p77, %p78
      %p81 = scmp.ne.s32.totalorder %s64, %s80
      %p82 = scmp.eq.s32.totalorder %s18, 0
      %p83 = por %p81, %p82
      %s84 = ssub.s32 %s20, %s27
      %p85 = scmp.eq.s32.totalorder %s84, 0
      %s87 = sadd.s32 %s86, 1
      %s88 = scalar_select %p85, %s86, %s87
      %p91 = pneg %p85
      %p92 = scmp.eq.s32.totalorder %s12, 1
      %p93 = por %p91, %p92
      %p94 = scmp.ne.s32.totalorder %s86, %s89
      %p95 = scmp.eq.s32.totalorder %s12, 0
      %p96 = por %p94, %p95
      %p97 = scmp.ne.s32.totalorder %s86, %s89
      %p98 = scmp.eq.s32.totalorder %s17, 1
      %p99 = por %p97, %p98
      %p100 = scmp.ne.s32.totalorder %s89, %s90
      %p101 = scmp.eq.s32.totalorder %s17, 0
      %p102 = por %p100, %p101
      %p103 = scmp.ne.s32.totalorder %s89, %s90
      %p104 = scmp.eq.s32.totalorder %s18, 1
      %p105 = por %p103, %p104
      %p107 = scmp.ne.s32.totalorder %s90, %s106
      %p108 = scmp.eq.s32.totalorder %s18, 0
      %p109 = por %p107, %p108
      %s110 = ssub.s32 %s19, %s31
      %s111 = ssub.s32 %s20, %s27
      %s112 = sor.u32 %s110, %s111
      %p113 = scmp.eq.s32.totalorder %s112, 0
      %s115 = sadd.s32 %s114, 1
      %s116 = scalar_select %p113, %s114, %s115
      %p119 = pneg %p113
      %p120 = scmp.eq.s32.totalorder %s12, 1
      %p121 = por %p119, %p120
      %p122 = scmp.ne.s32.totalorder %s114, %s117
      %p123 = scmp.eq.s32.totalorder %s12, 0
      %p124 = por %p122, %p123
      %p125 = scmp.ne.s32.totalorder %s114, %s117
      %p126 = scmp.eq.s32.totalorder %s17, 1
      %p127 = por %p125, %p126
      %p128 = scmp.ne.s32.totalorder %s117, %s118
      %p129 = scmp.eq.s32.totalorder %s17, 0
      %p130 = por %p128, %p129
      %p131 = scmp.ne.s32.totalorder %s117, %s118
      %p132 = scmp.eq.s32.totalorder %s18, 1
      %p133 = por %p131, %p132
      %p135 = scmp.ne.s32.totalorder %s118, %s134
      %p136 = scmp.eq.s32.totalorder %s18, 0
      %p137 = por %p135, %p136
      %p138 = scmp.le.s32.totalorder 1, %s12
      %p139 = scmp.lt.s32.totalorder %s12, 3
      %p140 = pnand %p138, %p139
      %p141 = pneg %p140
      // Predicated region
      $region9: #{tpu_custom_call.1} parent=5 // pred_check
        _
      $region10: #{tpu_custom_call.1} parent=5 // pred_check_branch
        %143 = sbr.rel (%p140) target = $region12
      $region11: #{tpu_custom_call.1} parent=5 // pred_region
        %s144 = ssub.s32 %s12, 1
        // Predicated region
        $region13: #{tpu_custom_call.1} parent=11 // pred_check
          %p145 = pneg %p76
        $region14: #{tpu_custom_call.1} parent=11 // pred_check_branch
          %147 = sbr.rel (%p145) target = $region16
        $region15: #{tpu_custom_call.1} parent=11 // pred_region
          %p148 = scmp.lt.s32.totalorder %s22, 0
          %s149 = scalar_select %p148, %s22, 0
          %s150 = smul.addr %s149, 4
          %s151 = scalar_lea.vmem %s1, %s150
        $region16: #{tpu_custom_call.1} parent=11 // pred_fallthru
          _
        // Predicated region
        $region17: #{tpu_custom_call.1} parent=11 // pred_check
          %p152 = pneg %p102
        $region18: #{tpu_custom_call.1} parent=11 // pred_check_branch
          %154 = sbr.rel (%p152) target = $region20
        $region19: #{tpu_custom_call.1} parent=11 // pred_region
          %p155 = scmp.lt.s32.totalorder %s22, 0
          %s156 = scalar_select %p155, %s22, 0
          %s157 = scalar_lea.vmem %s2, %s156
        $region20: #{tpu_custom_call.1} parent=11 // pred_fallthru
          _
      $region12: #{tpu_custom_call.1} parent=5 // pred_fallthru
        _
      %p158 = scmp.lt.s32.totalorder %s12, 2
      // Predicated region
      $region21: #{tpu_custom_call.1} parent=5 // pred_check
        %p159 = pneg %p158
      $region22: #{tpu_custom_call.1} parent=5 // pred_check_branch
        %161 = sbr.rel (%p159) target = $region24
      $region23: #{tpu_custom_call.1} parent=5 // pred_region
        // Predicated region
        $region25: #{tpu_custom_call.1} parent=23 // pred_check
          %p162 = pneg %p44
        $region26: #{tpu_custom_call.1} parent=23 // pred_check_branch
          %164 = sbr.rel (%p162) target = $region28
        $region27: #{tpu_custom_call.1} parent=23 // pred_region
          %p165 = scmp.lt.s32.totalorder %s19, 1
          %s166 = scalar_select %p165, %s19, 1
          %s167 = smul.addr %s166, 60
          %s168 = smul.addr %s167, 4
          %s169 = scalar_lea.vmem %s0, %s168
        $region28: #{tpu_custom_call.1} parent=23 // pred_fallthru
          _
      $region24: #{tpu_custom_call.1} parent=5 // pred_fallthru
        _
      %p170 = scmp.le.s32.totalorder 1, %s12
      %p171 = scmp.lt.s32.totalorder %s12, 3
      %p172 = pnand %p170, %p171
      %p173 = pneg %p172
      // Predicated region
      $region29: #{tpu_custom_call.1} parent=5 // pred_check
        _
      $region30: #{tpu_custom_call.1} parent=5 // pred_check_branch
        %175 = sbr.rel (%p172) target = $region32
      $region31: #{tpu_custom_call.1} parent=5 // pred_region
        %s176 = ssub.s32 %s12, 1
        %p177 = scmp.lt.s32.totalorder %s21, 1
        %s178 = scalar_select %p177, %s21, 1
        %s179 = smul.addr %s178, 60
        %s180 = smul.addr %s179, 4
        %s181 = scalar_lea.vmem %s0, %s180
        %p182 = pneg %p50
        %p183 = pneg %p47
        %p184 = scmp.lt.s32.totalorder %s22, 0
        %s185 = scalar_select %p184, %s22, 0
        %s186 = smul.addr %s185, 4
        %s187 = scalar_lea.vmem %s1, %s186
        %p188 = pneg %p76
        %p189 = pneg %p73
        %p190 = scmp.lt.s32.totalorder %s22, 0
        %s191 = scalar_select %p190, %s22, 0
        %s192 = scalar_lea.vmem %s2, %s191
        %p193 = pneg %p102
        %p194 = pneg %p99
        %p195 = pneg %p130
        %p196 = pneg %p127
        %s197 = sand.u32 %s117, 1
        %s198 = scalar_lea.sflag [#allocation3], %s197
        %s199 = sand.u32 %s117, 1
        %s200 = smul.addr %s199, 72
        %s201 = scalar_lea.vmem [#allocation2], %s200
        %p202 = scmp.lt.s32.totalorder %s21, 1
        %s203 = scalar_select %p202, %s21, 1
        %s204 = smul.addr %s203, 60
        %s205 = smul.addr %s204, 4
        %s206 = scalar_lea.vmem %s0, %s205
        %p207 = scmp.lt.s32.totalorder %s22, 0
        %s208 = scalar_select %p207, %s22, 0
        %s209 = smul.addr %s208, 4
        %s210 = scalar_lea.vmem %s1, %s209
        %p211 = scmp.lt.s32.totalorder %s22, 0
        %s212 = scalar_select %p211, %s22, 0
        %s213 = scalar_lea.vmem %s2, %s212
        %v215 = vld [vmem:[%s206] sm:$0xf]
        %v216 = vld [vmem:[%s206 + $0x4] sm:$0xf]
        %v217 = vld [vmem:[%s206 + $0x18] sm:$0xf]
        %v218 = vld [vmem:[%s206 + $0x1c] sm:$0xf]
        %v219 = vld [vmem:[%s206 + $0x30] sm:$0xf]
        %v220 = vld [vmem:[%s206 + $0x34] sm:$0xf]
        %v221 = vld [vmem:[%s206 + $0x48] sm:$0xf]
        %v222 = vld [vmem:[%s206 + $0x4c] sm:$0xf]
        %v223 = vld [vmem:[%s206 + $0x60] sm:$0xf]
        %v224 = vld [vmem:[%s206 + $0x64] sm:$0xf]
        %v225 = vld [vmem:[%s206 + $0x78] sm:$0xf]
        %v226 = vld [vmem:[%s206 + $0x7c] sm:$0xf]
        %v227 = vld [vmem:[%s206 + $0x90] sm:$0xf]
        %v228 = vld [vmem:[%s206 + $0x94] sm:$0xf]
        %v229 = vld [vmem:[%s206 + $0xa8] sm:$0xf]
        %v230 = vld [vmem:[%s206 + $0xac] sm:$0xf]
        %v231 = vld [vmem:[%s206 + $0xc0] sm:$0xf]
        %v232 = vld [vmem:[%s206 + $0xc4] sm:$0xf]
        %v233 = vld [vmem:[%s210] sm:$0xf]
        %v234 = vld [vmem:[%s206 + $0x8] sm:$0x1]
        %v235 = vld [vmem:[%s206 + $0x20] sm:$0x1]
        %v236 = vld [vmem:[%s206 + $0x38] sm:$0x1]
        %v237 = vld [vmem:[%s206 + $0x50] sm:$0x1]
        %v238 = vld [vmem:[%s206 + $0x68] sm:$0x1]
        %v239 = vld [vmem:[%s206 + $0x80] sm:$0x1]
        %v240 = vld [vmem:[%s206 + $0x98] sm:$0x1]
        %v241 = vld [vmem:[%s206 + $0xb0] sm:$0x1]
        %v242 = vld [vmem:[%s206 + $0xc8] sm:$0x1]
        %vm243 = vsmask.f32 3328
        %vm244 = vsmask.f32 7440
        %vm245 = vmor %vm243, %vm244
        %v247 = vshrl.u32 %v215, 16
        %v249 = vrot.slane %v247, 4
        %v250 = vshll.u32 %v215, 16
        %v252 = vrot.slane %v250, 5
        %v253 = vor.u32 %v249, %v252
        %v254 = vrot.slane %v253, 4
        %v256 = vshll.u32 %v216, 16
        %v258 = vrot.slane %v256, 5
        %v259 = vsel %vm245, %v254, %v258
        %v260 = vshrl.u32 %v216, 16
        %v262 = vrot.slane %v260, 4
        %v263 = vor.u32 %v262, %v258
        %v264 = vrot.slane %v263, 4
        %v266 = vshll.u32 %v234, 16
        %v268 = vrot.slane %v266, 5
        %v269 = vsel %vm245, %v264, %v268
        %v271 = vshrl.u32 %v217, 16
        %v273 = vrot.slane %v271, 4
        %v274 = vshll.u32 %v217, 16
        %v276 = vrot.slane %v274, 5
        %v277 = vor.u32 %v273, %v276
        %v278 = vrot.slane %v277, 4
        %v280 = vshll.u32 %v218, 16
        %v282 = vrot.slane %v280, 5
        %v283 = vsel %vm245, %v278, %v282
        %v284 = vshrl.u32 %v218, 16
        %v286 = vrot.slane %v284, 4
        %v287 = vor.u32 %v286, %v282
        %v288 = vrot.slane %v287, 4
        %v290 = vshll.u32 %v235, 16
        %v292 = vrot.slane %v290, 5
        %v293 = vsel %vm245, %v288, %v292
        %v295 = vshrl.u32 %v219, 16
        %v297 = vrot.slane %v295, 4
        %v298 = vshll.u32 %v219, 16
        %v300 = vrot.slane %v298, 5
        %v301 = vor.u32 %v297, %v300
        %v302 = vrot.slane %v301, 4
        %v304 = vshll.u32 %v220, 16
        %v306 = vrot.slane %v304, 5
        %v307 = vsel %vm245, %v302, %v306
        %v308 = vshrl.u32 %v220, 16
        %v310 = vrot.slane %v308, 4
        %v311 = vor.u32 %v310, %v306
        %v312 = vrot.slane %v311, 4
        %v314 = vshll.u32 %v236, 16
        %v316 = vrot.slane %v314, 5
        %v317 = vsel %vm245, %v312, %v316
        %v319 = vshrl.u32 %v221, 16
        %v321 = vrot.slane %v319, 4
        %v322 = vshll.u32 %v221, 16
        %v324 = vrot.slane %v322, 5
        %v325 = vor.u32 %v321, %v324
        %v326 = vrot.slane %v325, 4
        %v328 = vshll.u32 %v222, 16
        %v330 = vrot.slane %v328, 5
        %v331 = vsel %vm245, %v326, %v330
        %v332 = vshrl.u32 %v222, 16
        %v334 = vrot.slane %v332, 4
        %v335 = vor.u32 %v334, %v330
        %v336 = vrot.slane %v335, 4
        %v338 = vshll.u32 %v237, 16
        %v340 = vrot.slane %v338, 5
        %v341 = vsel %vm245, %v336, %v340
        %v343 = vshrl.u32 %v223, 16
        %v345 = vrot.slane %v343, 4
        %v346 = vshll.u32 %v223, 16
        %v348 = vrot.slane %v346, 5
        %v349 = vor.u32 %v345, %v348
        %v350 = vrot.slane %v349, 4
        %v352 = vshll.u32 %v224, 16
        %v354 = vrot.slane %v352, 5
        %v355 = vsel %vm245, %v350, %v354
        %v356 = vshrl.u32 %v224, 16
        %v358 = vrot.slane %v356, 4
        %v359 = vor.u32 %v358, %v354
        %v360 = vrot.slane %v359, 4
        %v362 = vshll.u32 %v238, 16
        %v364 = vrot.slane %v362, 5
        %v365 = vsel %vm245, %v360, %v364
        %v367 = vshrl.u32 %v225, 16
        %v369 = vrot.slane %v367, 4
        %v370 = vshll.u32 %v225, 16
        %v372 = vrot.slane %v370, 5
        %v373 = vor.u32 %v369, %v372
        %v374 = vrot.slane %v373, 4
        %v376 = vshll.u32 %v226, 16
        %v378 = vrot.slane %v376, 5
        %v379 = vsel %vm245, %v374, %v378
        %v380 = vshrl.u32 %v226, 16
        %v382 = vrot.slane %v380, 4
        %v383 = vor.u32 %v382, %v378
        %v384 = vrot.slane %v383, 4
        %v386 = vshll.u32 %v239, 16
        %v388 = vrot.slane %v386, 5
        %v389 = vsel %vm245, %v384, %v388
        %v391 = vshrl.u32 %v227, 16
        %v393 = vrot.slane %v391, 4
        %v394 = vshll.u32 %v227, 16
        %v396 = vrot.slane %v394, 5
        %v397 = vor.u32 %v393, %v396
        %v398 = vrot.slane %v397, 4
        %v400 = vshll.u32 %v228, 16
        %v402 = vrot.slane %v400, 5
        %v403 = vsel %vm245, %v398, %v402
        %v404 = vshrl.u32 %v228, 16
        %v406 = vrot.slane %v404, 4
        %v407 = vor.u32 %v406, %v402
        %v408 = vrot.slane %v407, 4
        %v410 = vshll.u32 %v240, 16
        %v412 = vrot.slane %v410, 5
        %v413 = vsel %vm245, %v408, %v412
        %v415 = vshrl.u32 %v229, 16
        %v417 = vrot.slane %v415, 4
        %v418 = vshll.u32 %v229, 16
        %v420 = vrot.slane %v418, 5
        %v421 = vor.u32 %v417, %v420
        %v422 = vrot.slane %v421, 4
        %v424 = vshll.u32 %v230, 16
        %v426 = vrot.slane %v424, 5
        %v427 = vsel %vm245, %v422, %v426
        %v428 = vshrl.u32 %v230, 16
        %v430 = vrot.slane %v428, 4
        %v431 = vor.u32 %v430, %v426
        %v432 = vrot.slane %v431, 4
        %v434 = vshll.u32 %v241, 16
        %v436 = vrot.slane %v434, 5
        %v437 = vsel %vm245, %v432, %v436
        %v439 = vshrl.u32 %v231, 16
        %v441 = vrot.slane %v439, 4
        %v442 = vshll.u32 %v231, 16
        %v444 = vrot.slane %v442, 5
        %v445 = vor.u32 %v441, %v444
        %v446 = vrot.slane %v445, 4
        %v448 = vshll.u32 %v232, 16
        %v450 = vrot.slane %v448, 5
        %v451 = vsel %vm245, %v446, %v450
        %v452 = vshrl.u32 %v232, 16
        %v454 = vrot.slane %v452, 4
        %v455 = vor.u32 %v454, %v450
        %v456 = vrot.slane %v455, 4
        %v458 = vshll.u32 %v242, 16
        %v460 = vrot.slane %v458, 5
        %v461 = vsel %vm245, %v456, %v460
        %s462 = scalar_lea.vmem %s210, 4
        %v463 = vld [vmem:[%s462] sm:$0xf]
        %v464 = vunpack.c.l.b16 %v259
        %v465 = vunpack.c.l.b16 %v269
        %v466 = vunpack.c.l.b16 %v283
        %v467 = vunpack.c.l.b16 %v293
        %v468 = vunpack.c.l.b16 %v307
        %v469 = vunpack.c.l.b16 %v317
        %v470 = vunpack.c.l.b16 %v331
        %v471 = vunpack.c.l.b16 %v341
        %v472 = vunpack.c.l.b16 %v355
        %v473 = vunpack.c.l.b16 %v365
        %v474 = vunpack.c.l.b16 %v379
        %v475 = vunpack.c.l.b16 %v389
        %v476 = vunpack.c.l.b16 %v403
        %v477 = vunpack.c.l.b16 %v413
        %v478 = vunpack.c.l.b16 %v427
        %v479 = vunpack.c.l.b16 %v437
        %v480 = vunpack.c.l.b16 %v451
        %v481 = vunpack.c.l.b16 %v461
        %v482 = vpack.c.b16 %v465, %v464
        %v483 = vpack.c.b16 %v467, %v466
        %v484 = vpack.c.b16 %v469, %v468
        %v485 = vpack.c.b16 %v471, %v470
        %v486 = vpack.c.b16 %v473, %v472
        %v487 = vpack.c.b16 %v475, %v474
        %v488 = vpack.c.b16 %v477, %v476
        %v489 = vpack.c.b16 %v479, %v478
        %v490 = vpack.c.b16 %v481, %v480
        %vm491 = vcmask 64512
        %v493 = vsel %vm491, %v482, 0
        %v496 = vsel %vm491, %v483, 0
        %v499 = vsel %vm491, %v484, 0
        %v502 = vsel %vm491, %v485, 0
        %v505 = vsel %vm491, %v486, 0
        %v508 = vsel %vm491, %v487, 0
        %v511 = vsel %vm491, %v488, 0
        %v514 = vsel %vm491, %v489, 0
        %v517 = vsel %vm491, %v490, 0
        %vm519 = vcmask 1043456
        %v521 = vsel %vm519, %v463, 0
        %523 = vmatprep.subr.bf16.mxu0 0
        %524 = vmatpush1.bf16.msra.mxu0 %v521
        %525 = vmatprep.subr.bf16.mxu0 0
        %526 = vmatpush1.bf16.msra.mxu0 0
        %527 = vmatprep.subr.bf16.mxu0 0
        %528 = vmatpush1.bf16.msra.mxu0 0
        %529 = vmatprep.subr.bf16.mxu0 0
        %530 = vmatpush1.bf16.msra.mxu0 0
        %531 = vmatprep.subr.bf16.mxu0 0
        %532 = vmatpush1.bf16.msra.mxu0 0
        %533 = vmatprep.subr.bf16.mxu0 0
        %534 = vmatpush1.bf16.msra.mxu0 0
        %535 = vmatprep.subr.bf16.mxu0 0
        %536 = vmatpush1.bf16.msra.mxu0 0
        %537 = vmatprep.subr.bf16.mxu0 0
        %538 = vmatpush1.bf16.msra.mxu0 0
        %539 = vmatprep.subr.bf16.mxu0 0
        %540 = vmatpush1.bf16.msra.mxu0 0
        %541 = vmatprep.subr.bf16.mxu0 0
        %542 = vmatpush1.bf16.msra.mxu0 0
        %543 = vmatprep.subr.bf16.mxu0 0
        %544 = vmatpush1.bf16.msra.mxu0 0
        %545 = vmatprep.subr.bf16.mxu0 0
        %546 = vmatpush1.bf16.msra.mxu0 0
        %547 = vmatprep.subr.bf16.mxu0 0
        %548 = vmatpush1.bf16.msra.mxu0 0
        %549 = vmatprep.subr.bf16.mxu0 0
        %550 = vmatpush1.bf16.msra.mxu0 0
        %551 = vmatprep.subr.bf16.mxu0 0
        %552 = vmatpush1.bf16.msra.mxu0 0
        %553 = vmatprep.subr.bf16.mxu0 0
        %554 = vmatpush1.bf16.msra.mxu0 0
        %555 = vmatprep.mubr.bf16.mxu0 0
        %556 = vmatmul.mubr.bf16.gmra.mrb[0].mxu0 %v493
        %v557 = vpop.f32.mrb[0].mxu0
        %v558 = vadd.f32 0.0, %v557
        %v559 = vpop.f32.mrb[0].mxu0
        %v560 = vpop.f32.mrb[0].mxu0
        %v561 = vadd.f32 0.0, %v560
        %v562 = vpop.f32.mrb[0].mxu0
        %563 = vmatprep.mubr.bf16.mxu0 0
        %564 = vmatmul.mubr.bf16.gmra.mrb[0].mxu0 %v496
        %v565 = vpop.f32.mrb[0].mxu0
        %v566 = vadd.f32 0.0, %v565
        %v567 = vpop.f32.mrb[0].mxu0
        %v568 = vpop.f32.mrb[0].mxu0
        %v569 = vadd.f32 0.0, %v568
        %v570 = vpop.f32.mrb[0].mxu0
        %571 = vmatprep.mubr.bf16.mxu0 0
        %572 = vmatmul.mubr.bf16.gmra.mrb[0].mxu0 %v499
        %v573 = vpop.f32.mrb[0].mxu0
        %v574 = vadd.f32 0.0, %v573
        %v575 = vpop.f32.mrb[0].mxu0
        %v576 = vpop.f32.mrb[0].mxu0
        %v577 = vadd.f32 0.0, %v576
        %v578 = vpop.f32.mrb[0].mxu0
        %579 = vmatprep.mubr.bf16.mxu0 0
        %580 = vmatmul.mubr.bf16.gmra.mrb[0].mxu0 %v502
        %v581 = vpop.f32.mrb[0].mxu0
        %v582 = vadd.f32 0.0, %v581
        %v583 = vpop.f32.mrb[0].mxu0
        %v584 = vpop.f32.mrb[0].mxu0
        %v585 = vadd.f32 0.0, %v584
        %v586 = vpop.f32.mrb[0].mxu0
        %587 = vmatprep.mubr.bf16.mxu0 0
        %588 = vmatmul.mubr.bf16.gmra.mrb[0].mxu0 %v505
        %v589 = vpop.f32.mrb[0].mxu0
        %v590 = vadd.f32 0.0, %v589
        %v591 = vpop.f32.mrb[0].mxu0
        %v592 = vpop.f32.mrb[0].mxu0
        %v593 = vadd.f32 0.0, %v592
        %v594 = vpop.f32.mrb[0].mxu0
        %595 = vmatprep.mubr.bf16.mxu0 0
        %596 = vmatmul.mubr.bf16.gmra.mrb[0].mxu0 %v508
        %v597 = vpop.f32.mrb[0].mxu0
        %v598 = vadd.f32 0.0, %v597
        %v599 = vpop.f32.mrb[0].mxu0
        %v600 = vpop.f32.mrb[0].mxu0
        %v601 = vadd.f32 0.0, %v600
        %v602 = vpop.f32.mrb[0].mxu0
        %603 = vmatprep.mubr.bf16.mxu0 0
        %604 = vmatmul.mubr.bf16.gmra.mrb[0].mxu0 %v511
        %v605 = vpop.f32.mrb[0].mxu0
        %v606 = vadd.f32 0.0, %v605
        %v607 = vpop.f32.mrb[0].mxu0
        %v608 = vpop.f32.mrb[0].mxu0
        %v609 = vadd.f32 0.0, %v608
        %v610 = vpop.f32.mrb[0].mxu0
        %611 = vmatprep.mubr.bf16.mxu0 0
        %612 = vmatmul.mubr.bf16.gmra.mrb[0].mxu0 %v514
        %v613 = vpop.f32.mrb[0].mxu0
        %v614 = vadd.f32 0.0, %v613
        %v615 = vpop.f32.mrb[0].mxu0
        %v616 = vpop.f32.mrb[0].mxu0
        %v617 = vadd.f32 0.0, %v616
        %v618 = vpop.f32.mrb[0].mxu0
        %619 = vmatprep.mubr.bf16.mxu0 0
        %620 = vmatmul.mubr.bf16.gmra.mrb[0].mxu0 %v517
        %v621 = vpop.f32.mrb[0].mxu0
        %v622 = vadd.f32 0.0, %v621
        %v623 = vpop.f32.mrb[0].mxu0
        %v624 = vpop.f32.mrb[0].mxu0
        %v625 = vadd.f32 0.0, %v624
        %v626 = vpop.f32.mrb[0].mxu0
        %627 = vdwg.mxu0
        %v646 = vunpack.c.l.b16 %v215
        %v647 = vunpack.c.l.b16 %v216
        %v648 = vunpack.c.l.b16 %v217
        %v649 = vunpack.c.l.b16 %v218
        %v650 = vunpack.c.l.b16 %v219
        %v651 = vunpack.c.l.b16 %v220
        %v652 = vunpack.c.l.b16 %v221
        %v653 = vunpack.c.l.b16 %v222
        %v654 = vunpack.c.l.b16 %v223
        %v655 = vunpack.c.l.b16 %v224
        %v656 = vunpack.c.l.b16 %v225
        %v657 = vunpack.c.l.b16 %v226
        %v658 = vunpack.c.l.b16 %v227
        %v659 = vunpack.c.l.b16 %v228
        %v660 = vunpack.c.l.b16 %v229
        %v661 = vunpack.c.l.b16 %v230
        %v662 = vunpack.c.l.b16 %v231
        %v663 = vunpack.c.l.b16 %v232
        %v664 = vpack.c.b16 %v647, %v646
        %v665 = vpack.c.b16 %v649, %v648
        %v666 = vpack.c.b16 %v651, %v650
        %v667 = vpack.c.b16 %v653, %v652
        %v668 = vpack.c.b16 %v655, %v654
        %v669 = vpack.c.b16 %v657, %v656
        %v670 = vpack.c.b16 %v659, %v658
        %v671 = vpack.c.b16 %v661, %v660
        %v672 = vpack.c.b16 %v663, %v662
        %v674 = vsel %vm491, %v664, 0
        %v677 = vsel %vm491, %v665, 0
        %v680 = vsel %vm491, %v666, 0
        %v683 = vsel %vm491, %v667, 0
        %v686 = vsel %vm491, %v668, 0
        %v689 = vsel %vm491, %v669, 0
        %v692 = vsel %vm491, %v670, 0
        %v695 = vsel %vm491, %v671, 0
        %v698 = vsel %vm491, %v672, 0
        %v701 = vsel %vm519, %v233, 0
        %703 = vmatprep.subr.bf16.mxu0 0
        %704 = vmatpush1.bf16.msra.mxu0 %v701
        %705 = vmatprep.subr.bf16.mxu0 0
        %706 = vmatpush1.bf16.msra.mxu0 0
        %707 = vmatprep.subr.bf16.mxu0 0
        %708 = vmatpush1.bf16.msra.mxu0 0
        %709 = vmatprep.subr.bf16.mxu0 0
        %710 = vmatpush1.bf16.msra.mxu0 0
        %711 = vmatprep.subr.bf16.mxu0 0
        %712 = vmatpush1.bf16.msra.mxu0 0
        %713 = vmatprep.subr.bf16.mxu0 0
        %714 = vmatpush1.bf16.msra.mxu0 0
        %715 = vmatprep.subr.bf16.mxu0 0
        %716 = vmatpush1.bf16.msra.mxu0 0
        %717 = vmatprep.subr.bf16.mxu0 0
        %718 = vmatpush1.bf16.msra.mxu0 0
        %719 = vmatprep.subr.bf16.mxu0 0
        %720 = vmatpush1.bf16.msra.mxu0 0
        %721 = vmatprep.subr.bf16.mxu0 0
        %722 = vmatpush1.bf16.msra.mxu0 0
        %723 = vmatprep.subr.bf16.mxu0 0
        %724 = vmatpush1.bf16.msra.mxu0 0
        %725 = vmatprep.subr.bf16.mxu0 0
        %726 = vmatpush1.bf16.msra.mxu0 0
        %727 = vmatprep.subr.bf16.mxu0 0
        %728 = vmatpush1.bf16.msra.mxu0 0
        %729 = vmatprep.subr.bf16.mxu0 0
        %730 = vmatpush1.bf16.msra.mxu0 0
        %731 = vmatprep.subr.bf16.mxu0 0
        %732 = vmatpush1.bf16.msra.mxu0 0
        %733 = vmatprep.subr.bf16.mxu0 0
        %734 = vmatpush1.bf16.msra.mxu0 0
        %735 = vmatprep.mubr.bf16.mxu0 0
        %736 = vmatmul.mubr.bf16.gmra.mrb[0].mxu0 %v674
        %v737 = vpop.f32.mrb[0].mxu0
        %v738 = vadd.f32 %v558, %v737
        %v739 = vpop.f32.mrb[0].mxu0
        %v740 = vpop.f32.mrb[0].mxu0
        %v741 = vadd.f32 %v561, %v740
        %v742 = vpop.f32.mrb[0].mxu0
        %743 = vmatprep.mubr.bf16.mxu0 0
        %744 = vmatmul.mubr.bf16.gmra.mrb[0].mxu0 %v677
        %v745 = vpop.f32.mrb[0].mxu0
        %v746 = vadd.f32 %v566, %v745
        %v747 = vpop.f32.mrb[0].mxu0
        %v748 = vpop.f32.mrb[0].mxu0
        %v749 = vadd.f32 %v569, %v748
        %v750 = vpop.f32.mrb[0].mxu0
        %751 = vmatprep.mubr.bf16.mxu0 0
        %752 = vmatmul.mubr.bf16.gmra.mrb[0].mxu0 %v680
        %v753 = vpop.f32.mrb[0].mxu0
        %v754 = vadd.f32 %v574, %v753
        %v755 = vpop.f32.mrb[0].mxu0
        %v756 = vpop.f32.mrb[0].mxu0
        %v757 = vadd.f32 %v577, %v756
        %v758 = vpop.f32.mrb[0].mxu0
        %759 = vmatprep.mubr.bf16.mxu0 0
        %760 = vmatmul.mubr.bf16.gmra.mrb[0].mxu0 %v683
        %v761 = vpop.f32.mrb[0].mxu0
        %v762 = vadd.f32 %v582, %v761
        %v763 = vpop.f32.mrb[0].mxu0
        %v764 = vpop.f32.mrb[0].mxu0
        %v765 = vadd.f32 %v585, %v764
        %v766 = vpop.f32.mrb[0].mxu0
        %767 = vmatprep.mubr.bf16.mxu0 0
        %768 = vmatmul.mubr.bf16.gmra.mrb[0].mxu0 %v686
        %v769 = vpop.f32.mrb[0].mxu0
        %v770 = vadd.f32 %v590, %v769
        %v771 = vpop.f32.mrb[0].mxu0
        %v772 = vpop.f32.mrb[0].mxu0
        %v773 = vadd.f32 %v593, %v772
        %v774 = vpop.f32.mrb[0].mxu0
        %775 = vmatprep.mubr.bf16.mxu0 0
        %776 = vmatmul.mubr.bf16.gmra.mrb[0].mxu0 %v689
        %v777 = vpop.f32.mrb[0].mxu0
        %v778 = vadd.f32 %v598, %v777
        %v779 = vpop.f32.mrb[0].mxu0
        %v780 = vpop.f32.mrb[0].mxu0
        %v781 = vadd.f32 %v601, %v780
        %v782 = vpop.f32.mrb[0].mxu0
        %783 = vmatprep.mubr.bf16.mxu0 0
        %784 = vmatmul.mubr.bf16.gmra.mrb[0].mxu0 %v692
        %v785 = vpop.f32.mrb[0].mxu0
        %v786 = vadd.f32 %v606, %v785
        %v787 = vpop.f32.mrb[0].mxu0
        %v788 = vpop.f32.mrb[0].mxu0
        %v789 = vadd.f32 %v609, %v788
        %v790 = vpop.f32.mrb[0].mxu0
        %791 = vmatprep.mubr.bf16.mxu0 0
        %792 = vmatmul.mubr.bf16.gmra.mrb[0].mxu0 %v695
        %v793 = vpop.f32.mrb[0].mxu0
        %v794 = vadd.f32 %v614, %v793
        %v795 = vpop.f32.mrb[0].mxu0
        %v796 = vpop.f32.mrb[0].mxu0
        %v797 = vadd.f32 %v617, %v796
        %v798 = vpop.f32.mrb[0].mxu0
        %799 = vmatprep.mubr.bf16.mxu0 0
        %800 = vmatmul.mubr.bf16.gmra.mrb[0].mxu0 %v698
        %v801 = vpop.f32.mrb[0].mxu0
        %v802 = vadd.f32 %v622, %v801
        %v803 = vpop.f32.mrb[0].mxu0
        %v804 = vpop.f32.mrb[0].mxu0
        %v805 = vadd.f32 %v625, %v804
        %v806 = vpop.f32.mrb[0].mxu0
        %807 = vdwg.mxu0
        %s808 = scalar_lea.vmem %s206, 12
        %v809 = vld [vmem:[%s808] sm:$0xf]
        %v810 = vld [vmem:[%s808 + $0x4] sm:$0xf]
        %v811 = vld [vmem:[%s808 + $0x18] sm:$0xf]
        %v812 = vld [vmem:[%s808 + $0x1c] sm:$0xf]
        %v813 = vld [vmem:[%s808 + $0x30] sm:$0xf]
        %v814 = vld [vmem:[%s808 + $0x34] sm:$0xf]
        %v815 = vld [vmem:[%s808 + $0x48] sm:$0xf]
        %v816 = vld [vmem:[%s808 + $0x4c] sm:$0xf]
        %v817 = vld [vmem:[%s808 + $0x60] sm:$0xf]
        %v818 = vld [vmem:[%s808 + $0x64] sm:$0xf]
        %v819 = vld [vmem:[%s808 + $0x78] sm:$0xf]
        %v820 = vld [vmem:[%s808 + $0x7c] sm:$0xf]
        %v821 = vld [vmem:[%s808 + $0x90] sm:$0xf]
        %v822 = vld [vmem:[%s808 + $0x94] sm:$0xf]
        %v823 = vld [vmem:[%s808 + $0xa8] sm:$0xf]
        %v824 = vld [vmem:[%s808 + $0xac] sm:$0xf]
        %v825 = vld [vmem:[%s808 + $0xc0] sm:$0xf]
        %v826 = vld [vmem:[%s808 + $0xc4] sm:$0xf]
        %s827 = scalar_lea.vmem %s210, 8
        %v828 = vld [vmem:[%s827] sm:$0xf]
        %v847 = vunpack.c.l.b16 %v809
        %v848 = vunpack.c.l.b16 %v810
        %v849 = vunpack.c.l.b16 %v811
        %v850 = vunpack.c.l.b16 %v812
        %v851 = vunpack.c.l.b16 %v813
        %v852 = vunpack.c.l.b16 %v814
        %v853 = vunpack.c.l.b16 %v815
        %v854 = vunpack.c.l.b16 %v816
        %v855 = vunpack.c.l.b16 %v817
        %v856 = vunpack.c.l.b16 %v818
        %v857 = vunpack.c.l.b16 %v819
        %v858 = vunpack.c.l.b16 %v820
        %v859 = vunpack.c.l.b16 %v821
        %v860 = vunpack.c.l.b16 %v822
        %v861 = vunpack.c.l.b16 %v823
        %v862 = vunpack.c.l.b16 %v824
        %v863 = vunpack.c.l.b16 %v825
        %v864 = vunpack.c.l.b16 %v826
        %v865 = vpack.c.b16 %v848, %v847
        %v866 = vpack.c.b16 %v850, %v849
        %v867 = vpack.c.b16 %v852, %v851
        %v868 = vpack.c.b16 %v854, %v853
        %v869 = vpack.c.b16 %v856, %v855
        %v870 = vpack.c.b16 %v858, %v857
        %v871 = vpack.c.b16 %v860, %v859
        %v872 = vpack.c.b16 %v862, %v861
        %v873 = vpack.c.b16 %v864, %v863
        %v875 = vsel %vm491, %v865, 0
        %v878 = vsel %vm491, %v866, 0
        %v881 = vsel %vm491, %v867, 0
        %v884 = vsel %vm491, %v868, 0
        %v887 = vsel %vm491, %v869, 0
        %v890 = vsel %vm491, %v870, 0
        %v893 = vsel %vm491, %v871, 0
        %v896 = vsel %vm491, %v872, 0
        %v899 = vsel %vm491, %v873, 0
        %v902 = vsel %vm519, %v828, 0
        %904 = vmatprep.subr.bf16.mxu0 0
        %905 = vmatpush1.bf16.msra.mxu0 %v902
        %906 = vmatprep.subr.bf16.mxu0 0
        %907 = vmatpush1.bf16.msra.mxu0 0
        %908 = vmatprep.subr.bf16.mxu0 0
        %909 = vmatpush1.bf16.msra.mxu0 0
        %910 = vmatprep.subr.bf16.mxu0 0
        %911 = vmatpush1.bf16.msra.mxu0 0
        %912 = vmatprep.subr.bf16.mxu0 0
        %913 = vmatpush1.bf16.msra.mxu0 0
        %914 = vmatprep.subr.bf16.mxu0 0
        %915 = vmatpush1.bf16.msra.mxu0 0
        %916 = vmatprep.subr.bf16.mxu0 0
        %917 = vmatpush1.bf16.msra.mxu0 0
        %918 = vmatprep.subr.bf16.mxu0 0
        %919 = vmatpush1.bf16.msra.mxu0 0
        %920 = vmatprep.subr.bf16.mxu0 0
        %921 = vmatpush1.bf16.msra.mxu0 0
        %922 = vmatprep.subr.bf16.mxu0 0
        %923 = vmatpush1.bf16.msra.mxu0 0
        %924 = vmatprep.subr.bf16.mxu0 0
        %925 = vmatpush1.bf16.msra.mxu0 0
        %926 = vmatprep.subr.bf16.mxu0 0
        %927 = vmatpush1.bf16.msra.mxu0 0
        %928 = vmatprep.subr.bf16.mxu0 0
        %929 = vmatpush1.bf16.msra.mxu0 0
        %930 = vmatprep.subr.bf16.mxu0 0
        %931 = vmatpush1.bf16.msra.mxu0 0
        %932 = vmatprep.subr.bf16.mxu0 0
        %933 = vmatpush1.bf16.msra.mxu0 0
        %934 = vmatprep.subr.bf16.mxu0 0
        %935 = vmatpush1.bf16.msra.mxu0 0
        %936 = vmatprep.mubr.bf16.mxu0 0
        %937 = vmatmul.mubr.bf16.gmra.mrb[0].mxu0 %v875
        %v938 = vpop.f32.mrb[0].mxu0
        %v939 = vadd.f32 0.0, %v938
        %v940 = vpop.f32.mrb[0].mxu0
        %v941 = vpop.f32.mrb[0].mxu0
        %v942 = vadd.f32 0.0, %v941
        %v943 = vpop.f32.mrb[0].mxu0
        %944 = vmatprep.mubr.bf16.mxu0 0
        %945 = vmatmul.mubr.bf16.gmra.mrb[0].mxu0 %v878
        %v946 = vpop.f32.mrb[0].mxu0
        %v947 = vadd.f32 0.0, %v946
        %v948 = vpop.f32.mrb[0].mxu0
        %v949 = vpop.f32.mrb[0].mxu0
        %v950 = vadd.f32 0.0, %v949
        %v951 = vpop.f32.mrb[0].mxu0
        %952 = vmatprep.mubr.bf16.mxu0 0
        %953 = vmatmul.mubr.bf16.gmra.mrb[0].mxu0 %v881
        %v954 = vpop.f32.mrb[0].mxu0
        %v955 = vadd.f32 0.0, %v954
        %v956 = vpop.f32.mrb[0].mxu0
        %v957 = vpop.f32.mrb[0].mxu0
        %v958 = vadd.f32 0.0, %v957
        %v959 = vpop.f32.mrb[0].mxu0
        %960 = vmatprep.mubr.bf16.mxu0 0
        %961 = vmatmul.mubr.bf16.gmra.mrb[0].mxu0 %v884
        %v962 = vpop.f32.mrb[0].mxu0
        %v963 = vadd.f32 0.0, %v962
        %v964 = vpop.f32.mrb[0].mxu0
        %v965 = vpop.f32.mrb[0].mxu0
        %v966 = vadd.f32 0.0, %v965
        %v967 = vpop.f32.mrb[0].mxu0
        %968 = vmatprep.mubr.bf16.mxu0 0
        %969 = vmatmul.mubr.bf16.gmra.mrb[0].mxu0 %v887
        %v970 = vpop.f32.mrb[0].mxu0
        %v971 = vadd.f32 0.0, %v970
        %v972 = vpop.f32.mrb[0].mxu0
        %v973 = vpop.f32.mrb[0].mxu0
        %v974 = vadd.f32 0.0, %v973
        %v975 = vpop.f32.mrb[0].mxu0
        %976 = vmatprep.mubr.bf16.mxu0 0
        %977 = vmatmul.mubr.bf16.gmra.mrb[0].mxu0 %v890
        %v978 = vpop.f32.mrb[0].mxu0
        %v979 = vadd.f32 0.0, %v978
        %v980 = vpop.f32.mrb[0].mxu0
        %v981 = vpop.f32.mrb[0].mxu0
        %v982 = vadd.f32 0.0, %v981
        %v983 = vpop.f32.mrb[0].mxu0
        %984 = vmatprep.mubr.bf16.mxu0 0
        %985 = vmatmul.mubr.bf16.gmra.mrb[0].mxu0 %v893
        %v986 = vpop.f32.mrb[0].mxu0
        %v987 = vadd.f32 0.0, %v986
        %v988 = vpop.f32.mrb[0].mxu0
        %v989 = vpop.f32.mrb[0].mxu0
        %v990 = vadd.f32 0.0, %v989
        %v991 = vpop.f32.mrb[0].mxu0
        %992 = vmatprep.mubr.bf16.mxu0 0
        %993 = vmatmul.mubr.bf16.gmra.mrb[0].mxu0 %v896
        %v994 = vpop.f32.mrb[0].mxu0
        %v995 = vadd.f32 0.0, %v994
        %v996 = vpop.f32.mrb[0].mxu0
        %v997 = vpop.f32.mrb[0].mxu0
        %v998 = vadd.f32 0.0, %v997
        %v999 = vpop.f32.mrb[0].mxu0
        %1000 = vmatprep.mubr.bf16.mxu0 0
        %1001 = vmatmul.mubr.bf16.gmra.mrb[0].mxu0 %v899
        %v1002 = vpop.f32.mrb[0].mxu0
        %v1003 = vadd.f32 0.0, %v1002
        %v1004 = vpop.f32.mrb[0].mxu0
        %v1005 = vpop.f32.mrb[0].mxu0
        %v1006 = vadd.f32 0.0, %v1005
        %v1007 = vpop.f32.mrb[0].mxu0
        %1008 = vdwg.mxu0
        %v1009 = vadd.f32 %v738, %v939
        %v1010 = vadd.f32 %v741, %v942
        %v1011 = vadd.f32 %v746, %v947
        %v1012 = vadd.f32 %v749, %v950
        %v1013 = vadd.f32 %v754, %v955
        %v1014 = vadd.f32 %v757, %v958
        %v1015 = vadd.f32 %v762, %v963
        %v1016 = vadd.f32 %v765, %v966
        %v1017 = vadd.f32 %v770, %v971
        %v1018 = vadd.f32 %v773, %v974
        %v1019 = vadd.f32 %v778, %v979
        %v1020 = vadd.f32 %v781, %v982
        %v1021 = vadd.f32 %v786, %v987
        %v1022 = vadd.f32 %v789, %v990
        %v1023 = vadd.f32 %v794, %v995
        %v1024 = vadd.f32 %v797, %v998
        %v1025 = vadd.f32 %v802, %v1003
        %v1026 = vadd.f32 %v805, %v1006
        %v1027 = vld [vmem:[%s808] sm:$0xf]
        %v1028 = vld [vmem:[%s808 + $0x4] sm:$0xf]
        %v1029 = vld [vmem:[%s808 + $0x8] sm:$0x1]
        %v1030 = vld [vmem:[%s808 + $0x18] sm:$0xf]
        %v1031 = vld [vmem:[%s808 + $0x1c] sm:$0xf]
        %v1032 = vld [vmem:[%s808 + $0x20] sm:$0x1]
        %v1033 = vld [vmem:[%s808 + $0x30] sm:$0xf]
        %v1034 = vld [vmem:[%s808 + $0x34] sm:$0xf]
        %v1035 = vld [vmem:[%s808 + $0x38] sm:$0x1]
        %v1036 = vld [vmem:[%s808 + $0x48] sm:$0xf]
        %v1037 = vld [vmem:[%s808 + $0x4c] sm:$0xf]
        %v1038 = vld [vmem:[%s808 + $0x50] sm:$0x1]
        %v1039 = vld [vmem:[%s808 + $0x60] sm:$0xf]
        %v1040 = vld [vmem:[%s808 + $0x64] sm:$0xf]
        %v1041 = vld [vmem:[%s808 + $0x68] sm:$0x1]
        %v1042 = vld [vmem:[%s808 + $0x78] sm:$0xf]
        %v1043 = vld [vmem:[%s808 + $0x7c] sm:$0xf]
        %v1044 = vld [vmem:[%s808 + $0x80] sm:$0x1]
        %v1045 = vld [vmem:[%s808 + $0x90] sm:$0xf]
        %v1046 = vld [vmem:[%s808 + $0x94] sm:$0xf]
        %v1047 = vld [vmem:[%s808 + $0x98] sm:$0x1]
        %v1048 = vld [vmem:[%s808 + $0xa8] sm:$0xf]
        %v1049 = vld [vmem:[%s808 + $0xac] sm:$0xf]
        %v1050 = vld [vmem:[%s808 + $0xb0] sm:$0x1]
        %v1051 = vld [vmem:[%s808 + $0xc0] sm:$0xf]
        %v1052 = vld [vmem:[%s808 + $0xc4] sm:$0xf]
        %v1053 = vld [vmem:[%s808 + $0xc8] sm:$0x1]
        %v1055 = vshrl.u32 %v1027, 16
        %v1057 = vrot.slane %v1055, 4
        %v1058 = vshll.u32 %v1027, 16
        %v1060 = vrot.slane %v1058, 5
        %v1061 = vor.u32 %v1057, %v1060
        %v1062 = vrot.slane %v1061, 4
        %v1064 = vshll.u32 %v1028, 16
        %v1066 = vrot.slane %v1064, 5
        %v1067 = vsel %vm245, %v1062, %v1066
        %v1068 = vshrl.u32 %v1028, 16
        %v1070 = vrot.slane %v1068, 4
        %v1071 = vor.u32 %v1070, %v1066
        %v1072 = vrot.slane %v1071, 4
        %v1074 = vshll.u32 %v1029, 16
        %v1076 = vrot.slane %v1074, 5
        %v1077 = vsel %vm245, %v1072, %v1076
        %v1079 = vshrl.u32 %v1030, 16
        %v1081 = vrot.slane %v1079, 4
        %v1082 = vshll.u32 %v1030, 16
        %v1084 = vrot.slane %v1082, 5
        %v1085 = vor.u32 %v1081, %v1084
        %v1086 = vrot.slane %v1085, 4
        %v1088 = vshll.u32 %v1031, 16
        %v1090 = vrot.slane %v1088, 5
        %v1091 = vsel %vm245, %v1086, %v1090
        %v1092 = vshrl.u32 %v1031, 16
        %v1094 = vrot.slane %v1092, 4
        %v1095 = vor.u32 %v1094, %v1090
        %v1096 = vrot.slane %v1095, 4
        %v1098 = vshll.u32 %v1032, 16
        %v1100 = vrot.slane %v1098, 5
        %v1101 = vsel %vm245, %v1096, %v1100
        %v1103 = vshrl.u32 %v1033, 16
        %v1105 = vrot.slane %v1103, 4
        %v1106 = vshll.u32 %v1033, 16
        %v1108 = vrot.slane %v1106, 5
        %v1109 = vor.u32 %v1105, %v1108
        %v1110 = vrot.slane %v1109, 4
        %v1112 = vshll.u32 %v1034, 16
        %v1114 = vrot.slane %v1112, 5
        %v1115 = vsel %vm245, %v1110, %v1114
        %v1116 = vshrl.u32 %v1034, 16
        %v1118 = vrot.slane %v1116, 4
        %v1119 = vor.u32 %v1118, %v1114
        %v1120 = vrot.slane %v1119, 4
        %v1122 = vshll.u32 %v1035, 16
        %v1124 = vrot.slane %v1122, 5
        %v1125 = vsel %vm245, %v1120, %v1124
        %v1127 = vshrl.u32 %v1036, 16
        %v1129 = vrot.slane %v1127, 4
        %v1130 = vshll.u32 %v1036, 16
        %v1132 = vrot.slane %v1130, 5
        %v1133 = vor.u32 %v1129, %v1132
        %v1134 = vrot.slane %v1133, 4
        %v1136 = vshll.u32 %v1037, 16
        %v1138 = vrot.slane %v1136, 5
        %v1139 = vsel %vm245, %v1134, %v1138
        %v1140 = vshrl.u32 %v1037, 16
        %v1142 = vrot.slane %v1140, 4
        %v1143 = vor.u32 %v1142, %v1138
        %v1144 = vrot.slane %v1143, 4
        %v1146 = vshll.u32 %v1038, 16
        %v1148 = vrot.slane %v1146, 5
        %v1149 = vsel %vm245, %v1144, %v1148
        %v1151 = vshrl.u32 %v1039, 16
        %v1153 = vrot.slane %v1151, 4
        %v1154 = vshll.u32 %v1039, 16
        %v1156 = vrot.slane %v1154, 5
        %v1157 = vor.u32 %v1153, %v1156
        %v1158 = vrot.slane %v1157, 4
        %v1160 = vshll.u32 %v1040, 16
        %v1162 = vrot.slane %v1160, 5
        %v1163 = vsel %vm245, %v1158, %v1162
        %v1164 = vshrl.u32 %v1040, 16
        %v1166 = vrot.slane %v1164, 4
        %v1167 = vor.u32 %v1166, %v1162
        %v1168 = vrot.slane %v1167, 4
        %v1170 = vshll.u32 %v1041, 16
        %v1172 = vrot.slane %v1170, 5
        %v1173 = vsel %vm245, %v1168, %v1172
        %v1175 = vshrl.u32 %v1042, 16
        %v1177 = vrot.slane %v1175, 4
        %v1178 = vshll.u32 %v1042, 16
        %v1180 = vrot.slane %v1178, 5
        %v1181 = vor.u32 %v1177, %v1180
        %v1182 = vrot.slane %v1181, 4
        %v1184 = vshll.u32 %v1043, 16
        %v1186 = vrot.slane %v1184, 5
        %v1187 = vsel %vm245, %v1182, %v1186
        %v1188 = vshrl.u32 %v1043, 16
        %v1190 = vrot.slane %v1188, 4
        %v1191 = vor.u32 %v1190, %v1186
        %v1192 = vrot.slane %v1191, 4
        %v1194 = vshll.u32 %v1044, 16
        %v1196 = vrot.slane %v1194, 5
        %v1197 = vsel %vm245, %v1192, %v1196
        %v1199 = vshrl.u32 %v1045, 16
        %v1201 = vrot.slane %v1199, 4
        %v1202 = vshll.u32 %v1045, 16
        %v1204 = vrot.slane %v1202, 5
        %v1205 = vor.u32 %v1201, %v1204
        %v1206 = vrot.slane %v1205, 4
        %v1208 = vshll.u32 %v1046, 16
        %v1210 = vrot.slane %v1208, 5
        %v1211 = vsel %vm245, %v1206, %v1210
        %v1212 = vshrl.u32 %v1046, 16
        %v1214 = vrot.slane %v1212, 4
        %v1215 = vor.u32 %v1214, %v1210
        %v1216 = vrot.slane %v1215, 4
        %v1218 = vshll.u32 %v1047, 16
        %v1220 = vrot.slane %v1218, 5
        %v1221 = vsel %vm245, %v1216, %v1220
        %v1223 = vshrl.u32 %v1048, 16
        %v1225 = vrot.slane %v1223, 4
        %v1226 = vshll.u32 %v1048, 16
        %v1228 = vrot.slane %v1226, 5
        %v1229 = vor.u32 %v1225, %v1228
        %v1230 = vrot.slane %v1229, 4
        %v1232 = vshll.u32 %v1049, 16
        %v1234 = vrot.slane %v1232, 5
        %v1235 = vsel %vm245, %v1230, %v1234
        %v1236 = vshrl.u32 %v1049, 16
        %v1238 = vrot.slane %v1236, 4
        %v1239 = vor.u32 %v1238, %v1234
        %v1240 = vrot.slane %v1239, 4
        %v1242 = vshll.u32 %v1050, 16
        %v1244 = vrot.slane %v1242, 5
        %v1245 = vsel %vm245, %v1240, %v1244
        %v1247 = vshrl.u32 %v1051, 16
        %v1249 = vrot.slane %v1247, 4
        %v1250 = vshll.u32 %v1051, 16
        %v1252 = vrot.slane %v1250, 5
        %v1253 = vor.u32 %v1249, %v1252
        %v1254 = vrot.slane %v1253, 4
        %v1256 = vshll.u32 %v1052, 16
        %v1258 = vrot.slane %v1256, 5
        %v1259 = vsel %vm245, %v1254, %v1258
        %v1260 = vshrl.u32 %v1052, 16
        %v1262 = vrot.slane %v1260, 4
        %v1263 = vor.u32 %v1262, %v1258
        %v1264 = vrot.slane %v1263, 4
        %v1266 = vshll.u32 %v1053, 16
        %v1268 = vrot.slane %v1266, 5
        %v1269 = vsel %vm245, %v1264, %v1268
        %s1270 = scalar_lea.vmem %s210, 12
        %v1271 = vld [vmem:[%s1270] sm:$0xf]
        %v1272 = vunpack.c.l.b16 %v1067
        %v1273 = vunpack.c.l.b16 %v1077
        %v1274 = vunpack.c.l.b16 %v1091
        %v1275 = vunpack.c.l.b16 %v1101
        %v1276 = vunpack.c.l.b16 %v1115
        %v1277 = vunpack.c.l.b16 %v1125
        %v1278 = vunpack.c.l.b16 %v1139
        %v1279 = vunpack.c.l.b16 %v1149
        %v1280 = vunpack.c.l.b16 %v1163
        %v1281 = vunpack.c.l.b16 %v1173
        %v1282 = vunpack.c.l.b16 %v1187
        %v1283 = vunpack.c.l.b16 %v1197
        %v1284 = vunpack.c.l.b16 %v1211
        %v1285 = vunpack.c.l.b16 %v1221
        %v1286 = vunpack.c.l.b16 %v1235
        %v1287 = vunpack.c.l.b16 %v1245
        %v1288 = vunpack.c.l.b16 %v1259
        %v1289 = vunpack.c.l.b16 %v1269
        %v1290 = vpack.c.b16 %v1273, %v1272
        %v1291 = vpack.c.b16 %v1275, %v1274
        %v1292 = vpack.c.b16 %v1277, %v1276
        %v1293 = vpack.c.b16 %v1279, %v1278
        %v1294 = vpack.c.b16 %v1281, %v1280
        %v1295 = vpack.c.b16 %v1283, %v1282
        %v1296 = vpack.c.b16 %v1285, %v1284
        %v1297 = vpack.c.b16 %v1287, %v1286
        %v1298 = vpack.c.b16 %v1289, %v1288
        %v1300 = vsel %vm491, %v1290, 0
        %v1303 = vsel %vm491, %v1291, 0
        %v1306 = vsel %vm491, %v1292, 0
        %v1309 = vsel %vm491, %v1293, 0
        %v1312 = vsel %vm491, %v1294, 0
        %v1315 = vsel %vm491, %v1295, 0
        %v1318 = vsel %vm491, %v1296, 0
        %v1321 = vsel %vm491, %v1297, 0
        %v1324 = vsel %vm491, %v1298, 0
        %v1327 = vsel %vm519, %v1271, 0
        %1329 = vmatprep.subr.bf16.mxu0 0
        %1330 = vmatpush1.bf16.msra.mxu0 %v1327
        %1331 = vmatprep.subr.bf16.mxu0 0
        %1332 = vmatpush1.bf16.msra.mxu0 0
        %1333 = vmatprep.subr.bf16.mxu0 0
        %1334 = vmatpush1.bf16.msra.mxu0 0
        %1335 = vmatprep.subr.bf16.mxu0 0
        %1336 = vmatpush1.bf16.msra.mxu0 0
        %1337 = vmatprep.subr.bf16.mxu0 0
        %1338 = vmatpush1.bf16.msra.mxu0 0
        %1339 = vmatprep.subr.bf16.mxu0 0
        %1340 = vmatpush1.bf16.msra.mxu0 0
        %1341 = vmatprep.subr.bf16.mxu0 0
        %1342 = vmatpush1.bf16.msra.mxu0 0
        %1343 = vmatprep.subr.bf16.mxu0 0
        %1344 = vmatpush1.bf16.msra.mxu0 0
        %1345 = vmatprep.subr.bf16.mxu0 0
        %1346 = vmatpush1.bf16.msra.mxu0 0
        %1347 = vmatprep.subr.bf16.mxu0 0
        %1348 = vmatpush1.bf16.msra.mxu0 0
        %1349 = vmatprep.subr.bf16.mxu0 0
        %1350 = vmatpush1.bf16.msra.mxu0 0
        %1351 = vmatprep.subr.bf16.mxu0 0
        %1352 = vmatpush1.bf16.msra.mxu0 0
        %1353 = vmatprep.subr.bf16.mxu0 0
        %1354 = vmatpush1.bf16.msra.mxu0 0
        %1355 = vmatprep.subr.bf16.mxu0 0
        %1356 = vmatpush1.bf16.msra.mxu0 0
        %1357 = vmatprep.subr.bf16.mxu0 0
        %1358 = vmatpush1.bf16.msra.mxu0 0
        %1359 = vmatprep.subr.bf16.mxu0 0
        %1360 = vmatpush1.bf16.msra.mxu0 0
        %1361 = vmatprep.mubr.bf16.mxu0 0
        %1362 = vmatmul.mubr.bf16.gmra.mrb[0].mxu0 %v1300
        %v1363 = vpop.f32.mrb[0].mxu0
        %v1364 = vadd.f32 0.0, %v1363
        %v1365 = vpop.f32.mrb[0].mxu0
        %v1366 = vpop.f32.mrb[0].mxu0
        %v1367 = vadd.f32 0.0, %v1366
        %v1368 = vpop.f32.mrb[0].mxu0
        %1369 = vmatprep.mubr.bf16.mxu0 0
        %1370 = vmatmul.mubr.bf16.gmra.mrb[0].mxu0 %v1303
        %v1371 = vpop.f32.mrb[0].mxu0
        %v1372 = vadd.f32 0.0, %v1371
        %v1373 = vpop.f32.mrb[0].mxu0
        %v1374 = vpop.f32.mrb[0].mxu0
        %v1375 = vadd.f32 0.0, %v1374
        %v1376 = vpop.f32.mrb[0].mxu0
        %1377 = vmatprep.mubr.bf16.mxu0 0
        %1378 = vmatmul.mubr.bf16.gmra.mrb[0].mxu0 %v1306
        %v1379 = vpop.f32.mrb[0].mxu0
        %v1380 = vadd.f32 0.0, %v1379
        %v1381 = vpop.f32.mrb[0].mxu0
        %v1382 = vpop.f32.mrb[0].mxu0
        %v1383 = vadd.f32 0.0, %v1382
        %v1384 = vpop.f32.mrb[0].mxu0
        %1385 = vmatprep.mubr.bf16.mxu0 0
        %1386 = vmatmul.mubr.bf16.gmra.mrb[0].mxu0 %v1309
        %v1387 = vpop.f32.mrb[0].mxu0
        %v1388 = vadd.f32 0.0, %v1387
        %v1389 = vpop.f32.mrb[0].mxu0
        %v1390 = vpop.f32.mrb[0].mxu0
        %v1391 = vadd.f32 0.0, %v1390
        %v1392 = vpop.f32.mrb[0].mxu0
        %1393 = vmatprep.mubr.bf16.mxu0 0
        %1394 = vmatmul.mubr.bf16.gmra.mrb[0].mxu0 %v1312
        %v1395 = vpop.f32.mrb[0].mxu0
        %v1396 = vadd.f32 0.0, %v1395
        %v1397 = vpop.f32.mrb[0].mxu0
        %v1398 = vpop.f32.mrb[0].mxu0
        %v1399 = vadd.f32 0.0, %v1398
        %v1400 = vpop.f32.mrb[0].mxu0
        %1401 = vmatprep.mubr.bf16.mxu0 0
        %1402 = vmatmul.mubr.bf16.gmra.mrb[0].mxu0 %v1315
        %v1403 = vpop.f32.mrb[0].mxu0
        %v1404 = vadd.f32 0.0, %v1403
        %v1405 = vpop.f32.mrb[0].mxu0
        %v1406 = vpop.f32.mrb[0].mxu0
        %v1407 = vadd.f32 0.0, %v1406
        %v1408 = vpop.f32.mrb[0].mxu0
        %1409 = vmatprep.mubr.bf16.mxu0 0
        %1410 = vmatmul.mubr.bf16.gmra.mrb[0].mxu0 %v1318
        %v1411 = vpop.f32.mrb[0].mxu0
        %v1412 = vadd.f32 0.0, %v1411
        %v1413 = vpop.f32.mrb[0].mxu0
        %v1414 = vpop.f32.mrb[0].mxu0
        %v1415 = vadd.f32 0.0, %v1414
        %v1416 = vpop.f32.mrb[0].mxu0
        %1417 = vmatprep.mubr.bf16.mxu0 0
        %1418 = vmatmul.mubr.bf16.gmra.mrb[0].mxu0 %v1321
        %v1419 = vpop.f32.mrb[0].mxu0
        %v1420 = vadd.f32 0.0, %v1419
        %v1421 = vpop.f32.mrb[0].mxu0
        %v1422 = vpop.f32.mrb[0].mxu0
        %v1423 = vadd.f32 0.0, %v1422
        %v1424 = vpop.f32.mrb[0].mxu0
        %1425 = vmatprep.mubr.bf16.mxu0 0
        %1426 = vmatmul.mubr.bf16.gmra.mrb[0].mxu0 %v1324
        %v1427 = vpop.f32.mrb[0].mxu0
        %v1428 = vadd.f32 0.0, %v1427
        %v1429 = vpop.f32.mrb[0].mxu0
        %v1430 = vpop.f32.mrb[0].mxu0
        %v1431 = vadd.f32 0.0, %v1430
        %v1432 = vpop.f32.mrb[0].mxu0
        %1433 = vdwg.mxu0
        %v1434 = vadd.f32 %v1009, %v1364
        %v1435 = vadd.f32 %v1010, %v1367
        %v1436 = vadd.f32 %v1011, %v1372
        %v1437 = vadd.f32 %v1012, %v1375
        %v1438 = vadd.f32 %v1013, %v1380
        %v1439 = vadd.f32 %v1014, %v1383
        %v1440 = vadd.f32 %v1015, %v1388
        %v1441 = vadd.f32 %v1016, %v1391
        %v1442 = vadd.f32 %v1017, %v1396
        %v1443 = vadd.f32 %v1018, %v1399
        %v1444 = vadd.f32 %v1019, %v1404
        %v1445 = vadd.f32 %v1020, %v1407
        %v1446 = vadd.f32 %v1021, %v1412
        %v1447 = vadd.f32 %v1022, %v1415
        %v1448 = vadd.f32 %v1023, %v1420
        %v1449 = vadd.f32 %v1024, %v1423
        %v1450 = vadd.f32 %v1025, %v1428
        %v1451 = vadd.f32 %v1026, %v1431
        %s1452 = scalar_lea.vmem %s206, 24
        %v1453 = vld [vmem:[%s1452] sm:$0xf]
        %v1454 = vld [vmem:[%s1452 + $0x4] sm:$0xf]
        %v1455 = vld [vmem:[%s1452 + $0x18] sm:$0xf]
        %v1456 = vld [vmem:[%s1452 + $0x1c] sm:$0xf]
        %v1457 = vld [vmem:[%s1452 + $0x30] sm:$0xf]
        %v1458 = vld [vmem:[%s1452 + $0x34] sm:$0xf]
        %v1459 = vld [vmem:[%s1452 + $0x48] sm:$0xf]
        %v1460 = vld [vmem:[%s1452 + $0x4c] sm:$0xf]
        %v1461 = vld [vmem:[%s1452 + $0x60] sm:$0xf]
        %v1462 = vld [vmem:[%s1452 + $0x64] sm:$0xf]
        %v1463 = vld [vmem:[%s1452 + $0x78] sm:$0xf]
        %v1464 = vld [vmem:[%s1452 + $0x7c] sm:$0xf]
        %v1465 = vld [vmem:[%s1452 + $0x90] sm:$0xf]
        %v1466 = vld [vmem:[%s1452 + $0x94] sm:$0xf]
        %v1467 = vld [vmem:[%s1452 + $0xa8] sm:$0xf]
        %v1468 = vld [vmem:[%s1452 + $0xac] sm:$0xf]
        %v1469 = vld [vmem:[%s1452 + $0xc0] sm:$0xf]
        %v1470 = vld [vmem:[%s1452 + $0xc4] sm:$0xf]
        %s1471 = scalar_lea.vmem %s210, 16
        %v1472 = vld [vmem:[%s1471] sm:$0xf]
        %v1491 = vunpack.c.l.b16 %v1453
        %v1492 = vunpack.c.l.b16 %v1454
        %v1493 = vunpack.c.l.b16 %v1455
        %v1494 = vunpack.c.l.b16 %v1456
        %v1495 = vunpack.c.l.b16 %v1457
        %v1496 = vunpack.c.l.b16 %v1458
        %v1497 = vunpack.c.l.b16 %v1459
        %v1498 = vunpack.c.l.b16 %v1460
        %v1499 = vunpack.c.l.b16 %v1461
        %v1500 = vunpack.c.l.b16 %v1462
        %v1501 = vunpack.c.l.b16 %v1463
        %v1502 = vunpack.c.l.b16 %v1464
        %v1503 = vunpack.c.l.b16 %v1465
        %v1504 = vunpack.c.l.b16 %v1466
        %v1505 = vunpack.c.l.b16 %v1467
        %v1506 = vunpack.c.l.b16 %v1468
        %v1507 = vunpack.c.l.b16 %v1469
        %v1508 = vunpack.c.l.b16 %v1470
        %v1509 = vpack.c.b16 %v1492, %v1491
        %v1510 = vpack.c.b16 %v1494, %v1493
        %v1511 = vpack.c.b16 %v1496, %v1495
        %v1512 = vpack.c.b16 %v1498, %v1497
        %v1513 = vpack.c.b16 %v1500, %v1499
        %v1514 = vpack.c.b16 %v1502, %v1501
        %v1515 = vpack.c.b16 %v1504, %v1503
        %v1516 = vpack.c.b16 %v1506, %v1505
        %v1517 = vpack.c.b16 %v1508, %v1507
        %v1519 = vsel %vm491, %v1509, 0
        %v1522 = vsel %vm491, %v1510, 0
        %v1525 = vsel %vm491, %v1511, 0
        %v1528 = vsel %vm491, %v1512, 0
        %v1531 = vsel %vm491, %v1513, 0
        %v1534 = vsel %vm491, %v1514, 0
        %v1537 = vsel %vm491, %v1515, 0
        %v1540 = vsel %vm491, %v1516, 0
        %v1543 = vsel %vm491, %v1517, 0
        %v1546 = vsel %vm519, %v1472, 0
        %1548 = vmatprep.subr.bf16.mxu0 0
        %1549 = vmatpush1.bf16.msra.mxu0 %v1546
        %1550 = vmatprep.subr.bf16.mxu0 0
        %1551 = vmatpush1.bf16.msra.mxu0 0
        %1552 = vmatprep.subr.bf16.mxu0 0
        %1553 = vmatpush1.bf16.msra.mxu0 0
        %1554 = vmatprep.subr.bf16.mxu0 0
        %1555 = vmatpush1.bf16.msra.mxu0 0
        %1556 = vmatprep.subr.bf16.mxu0 0
        %1557 = vmatpush1.bf16.msra.mxu0 0
        %1558 = vmatprep.subr.bf16.mxu0 0
        %1559 = vmatpush1.bf16.msra.mxu0 0
        %1560 = vmatprep.subr.bf16.mxu0 0
        %1561 = vmatpush1.bf16.msra.mxu0 0
        %1562 = vmatprep.subr.bf16.mxu0 0
        %1563 = vmatpush1.bf16.msra.mxu0 0
        %1564 = vmatprep.subr.bf16.mxu0 0
        %1565 = vmatpush1.bf16.msra.mxu0 0
        %1566 = vmatprep.subr.bf16.mxu0 0
        %1567 = vmatpush1.bf16.msra.mxu0 0
        %1568 = vmatprep.subr.bf16.mxu0 0
        %1569 = vmatpush1.bf16.msra.mxu0 0
        %1570 = vmatprep.subr.bf16.mxu0 0
        %1571 = vmatpush1.bf16.msra.mxu0 0
        %1572 = vmatprep.subr.bf16.mxu0 0
        %1573 = vmatpush1.bf16.msra.mxu0 0
        %1574 = vmatprep.subr.bf16.mxu0 0
        %1575 = vmatpush1.bf16.msra.mxu0 0
        %1576 = vmatprep.subr.bf16.mxu0 0
        %1577 = vmatpush1.bf16.msra.mxu0 0
        %1578 = vmatprep.subr.bf16.mxu0 0
        %1579 = vmatpush1.bf16.msra.mxu0 0
        %1580 = vmatprep.mubr.bf16.mxu0 0
        %1581 = vmatmul.mubr.bf16.gmra.mrb[0].mxu0 %v1519
        %v1582 = vpop.f32.mrb[0].mxu0
        %v1583 = vadd.f32 0.0, %v1582
        %v1584 = vpop.f32.mrb[0].mxu0
        %v1585 = vpop.f32.mrb[0].mxu0
        %v1586 = vadd.f32 0.0, %v1585
        %v1587 = vpop.f32.mrb[0].mxu0
        %1588 = vmatprep.mubr.bf16.mxu0 0
        %1589 = vmatmul.mubr.bf16.gmra.mrb[0].mxu0 %v1522
        %v1590 = vpop.f32.mrb[0].mxu0
        %v1591 = vadd.f32 0.0, %v1590
        %v1592 = vpop.f32.mrb[0].mxu0
        %v1593 = vpop.f32.mrb[0].mxu0
        %v1594 = vadd.f32 0.0, %v1593
        %v1595 = vpop.f32.mrb[0].mxu0
        %1596 = vmatprep.mubr.bf16.mxu0 0
        %1597 = vmatmul.mubr.bf16.gmra.mrb[0].mxu0 %v1525
        %v1598 = vpop.f32.mrb[0].mxu0
        %v1599 = vadd.f32 0.0, %v1598
        %v1600 = vpop.f32.mrb[0].mxu0
        %v1601 = vpop.f32.mrb[0].mxu0
        %v1602 = vadd.f32 0.0, %v1601
        %v1603 = vpop.f32.mrb[0].mxu0
        %1604 = vmatprep.mubr.bf16.mxu0 0
        %1605 = vmatmul.mubr.bf16.gmra.mrb[0].mxu0 %v1528
        %v1606 = vpop.f32.mrb[0].mxu0
        %v1607 = vadd.f32 0.0, %v1606
        %v1608 = vpop.f32.mrb[0].mxu0
        %v1609 = vpop.f32.mrb[0].mxu0
        %v1610 = vadd.f32 0.0, %v1609
        %v1611 = vpop.f32.mrb[0].mxu0
        %1612 = vmatprep.mubr.bf16.mxu0 0
        %1613 = vmatmul.mubr.bf16.gmra.mrb[0].mxu0 %v1531
        %v1614 = vpop.f32.mrb[0].mxu0
        %v1615 = vadd.f32 0.0, %v1614
        %v1616 = vpop.f32.mrb[0].mxu0
        %v1617 = vpop.f32.mrb[0].mxu0
        %v1618 = vadd.f32 0.0, %v1617
        %v1619 = vpop.f32.mrb[0].mxu0
        %1620 = vmatprep.mubr.bf16.mxu0 0
        %1621 = vmatmul.mubr.bf16.gmra.mrb[0].mxu0 %v1534
        %v1622 = vpop.f32.mrb[0].mxu0
        %v1623 = vadd.f32 0.0, %v1622
        %v1624 = vpop.f32.mrb[0].mxu0
        %v1625 = vpop.f32.mrb[0].mxu0
        %v1626 = vadd.f32 0.0, %v1625
        %v1627 = vpop.f32.mrb[0].mxu0
        %1628 = vmatprep.mubr.bf16.mxu0 0
        %1629 = vmatmul.mubr.bf16.gmra.mrb[0].mxu0 %v1537
        %v1630 = vpop.f32.mrb[0].mxu0
        %v1631 = vadd.f32 0.0, %v1630
        %v1632 = vpop.f32.mrb[0].mxu0
        %v1633 = vpop.f32.mrb[0].mxu0
        %v1634 = vadd.f32 0.0, %v1633
        %v1635 = vpop.f32.mrb[0].mxu0
        %1636 = vmatprep.mubr.bf16.mxu0 0
        %1637 = vmatmul.mubr.bf16.gmra.mrb[0].mxu0 %v1540
        %v1638 = vpop.f32.mrb[0].mxu0
        %v1639 = vadd.f32 0.0, %v1638
        %v1640 = vpop.f32.mrb[0].mxu0
        %v1641 = vpop.f32.mrb[0].mxu0
        %v1642 = vadd.f32 0.0, %v1641
        %v1643 = vpop.f32.mrb[0].mxu0
        %1644 = vmatprep.mubr.bf16.mxu0 0
        %1645 = vmatmul.mubr.bf16.gmra.mrb[0].mxu0 %v1543
        %v1646 = vpop.f32.mrb[0].mxu0
        %v1647 = vadd.f32 0.0, %v1646
        %v1648 = vpop.f32.mrb[0].mxu0
        %v1649 = vpop.f32.mrb[0].mxu0
        %v1650 = vadd.f32 0.0, %v1649
        %v1651 = vpop.f32.mrb[0].mxu0
        %1652 = vdwg.mxu0
        %v1653 = vadd.f32 %v1434, %v1583
        %v1654 = vadd.f32 %v1435, %v1586
        %v1655 = vadd.f32 %v1436, %v1591
        %v1656 = vadd.f32 %v1437, %v1594
        %v1657 = vadd.f32 %v1438, %v1599
        %v1658 = vadd.f32 %v1439, %v1602
        %v1659 = vadd.f32 %v1440, %v1607
        %v1660 = vadd.f32 %v1441, %v1610
        %v1661 = vadd.f32 %v1442, %v1615
        %v1662 = vadd.f32 %v1443, %v1618
        %v1663 = vadd.f32 %v1444, %v1623
        %v1664 = vadd.f32 %v1445, %v1626
        %v1665 = vadd.f32 %v1446, %v1631
        %v1666 = vadd.f32 %v1447, %v1634
        %v1667 = vadd.f32 %v1448, %v1639
        %v1668 = vadd.f32 %v1449, %v1642
        %v1669 = vadd.f32 %v1450, %v1647
        %v1670 = vadd.f32 %v1451, %v1650
        %v1671 = vld [vmem:[%s1452] sm:$0xf]
        %v1672 = vld [vmem:[%s1452 + $0x4] sm:$0xf]
        %v1673 = vld [vmem:[%s1452 + $0x8] sm:$0x1]
        %v1674 = vld [vmem:[%s1452 + $0x18] sm:$0xf]
        %v1675 = vld [vmem:[%s1452 + $0x1c] sm:$0xf]
        %v1676 = vld [vmem:[%s1452 + $0x20] sm:$0x1]
        %v1677 = vld [vmem:[%s1452 + $0x30] sm:$0xf]
        %v1678 = vld [vmem:[%s1452 + $0x34] sm:$0xf]
        %v1679 = vld [vmem:[%s1452 + $0x38] sm:$0x1]
        %v1680 = vld [vmem:[%s1452 + $0x48] sm:$0xf]
        %v1681 = vld [vmem:[%s1452 + $0x4c] sm:$0xf]
        %v1682 = vld [vmem:[%s1452 + $0x50] sm:$0x1]
        %v1683 = vld [vmem:[%s1452 + $0x60] sm:$0xf]
        %v1684 = vld [vmem:[%s1452 + $0x64] sm:$0xf]
        %v1685 = vld [vmem:[%s1452 + $0x68] sm:$0x1]
        %v1686 = vld [vmem:[%s1452 + $0x78] sm:$0xf]
        %v1687 = vld [vmem:[%s1452 + $0x7c] sm:$0xf]
        %v1688 = vld [vmem:[%s1452 + $0x80] sm:$0x1]
        %v1689 = vld [vmem:[%s1452 + $0x90] sm:$0xf]
        %v1690 = vld [vmem:[%s1452 + $0x94] sm:$0xf]
        %v1691 = vld [vmem:[%s1452 + $0x98] sm:$0x1]
        %v1692 = vld [vmem:[%s1452 + $0xa8] sm:$0xf]
        %v1693 = vld [vmem:[%s1452 + $0xac] sm:$0xf]
        %v1694 = vld [vmem:[%s1452 + $0xb0] sm:$0x1]
        %v1695 = vld [vmem:[%s1452 + $0xc0] sm:$0xf]
        %v1696 = vld [vmem:[%s1452 + $0xc4] sm:$0xf]
        %v1697 = vld [vmem:[%s1452 + $0xc8] sm:$0x1]
        %v1699 = vshrl.u32 %v1671, 16
        %v1701 = vrot.slane %v1699, 4
        %v1702 = vshll.u32 %v1671, 16
        %v1704 = vrot.slane %v1702, 5
        %v1705 = vor.u32 %v1701, %v1704
        %v1706 = vrot.slane %v1705, 4
        %v1708 = vshll.u32 %v1672, 16
        %v1710 = vrot.slane %v1708, 5
        %v1711 = vsel %vm245, %v1706, %v1710
        %v1712 = vshrl.u32 %v1672, 16
        %v1714 = vrot.slane %v1712, 4
        %v1715 = vor.u32 %v1714, %v1710
        %v1716 = vrot.slane %v1715, 4
        %v1718 = vshll.u32 %v1673, 16
        %v1720 = vrot.slane %v1718, 5
        %v1721 = vsel %vm245, %v1716, %v1720
        %v1723 = vshrl.u32 %v1674, 16
        %v1725 = vrot.slane %v1723, 4
        %v1726 = vshll.u32 %v1674, 16
        %v1728 = vrot.slane %v1726, 5
        %v1729 = vor.u32 %v1725, %v1728
        %v1730 = vrot.slane %v1729, 4
        %v1732 = vshll.u32 %v1675, 16
        %v1734 = vrot.slane %v1732, 5
        %v1735 = vsel %vm245, %v1730, %v1734
        %v1736 = vshrl.u32 %v1675, 16
        %v1738 = vrot.slane %v1736, 4
        %v1739 = vor.u32 %v1738, %v1734
        %v1740 = vrot.slane %v1739, 4
        %v1742 = vshll.u32 %v1676, 16
        %v1744 = vrot.slane %v1742, 5
        %v1745 = vsel %vm245, %v1740, %v1744
        %v1747 = vshrl.u32 %v1677, 16
        %v1749 = vrot.slane %v1747, 4
        %v1750 = vshll.u32 %v1677, 16
        %v1752 = vrot.slane %v1750, 5
        %v1753 = vor.u32 %v1749, %v1752
        %v1754 = vrot.slane %v1753, 4
        %v1756 = vshll.u32 %v1678, 16
        %v1758 = vrot.slane %v1756, 5
        %v1759 = vsel %vm245, %v1754, %v1758
        %v1760 = vshrl.u32 %v1678, 16
        %v1762 = vrot.slane %v1760, 4
        %v1763 = vor.u32 %v1762, %v1758
        %v1764 = vrot.slane %v1763, 4
        %v1766 = vshll.u32 %v1679, 16
        %v1768 = vrot.slane %v1766, 5
        %v1769 = vsel %vm245, %v1764, %v1768
        %v1771 = vshrl.u32 %v1680, 16
        %v1773 = vrot.slane %v1771, 4
        %v1774 = vshll.u32 %v1680, 16
        %v1776 = vrot.slane %v1774, 5
        %v1777 = vor.u32 %v1773, %v1776
        %v1778 = vrot.slane %v1777, 4
        %v1780 = vshll.u32 %v1681, 16
        %v1782 = vrot.slane %v1780, 5
        %v1783 = vsel %vm245, %v1778, %v1782
        %v1784 = vshrl.u32 %v1681, 16
        %v1786 = vrot.slane %v1784, 4
        %v1787 = vor.u32 %v1786, %v1782
        %v1788 = vrot.slane %v1787, 4
        %v1790 = vshll.u32 %v1682, 16
        %v1792 = vrot.slane %v1790, 5
        %v1793 = vsel %vm245, %v1788, %v1792
        %v1795 = vshrl.u32 %v1683, 16
        %v1797 = vrot.slane %v1795, 4
        %v1798 = vshll.u32 %v1683, 16
        %v1800 = vrot.slane %v1798, 5
        %v1801 = vor.u32 %v1797, %v1800
        %v1802 = vrot.slane %v1801, 4
        %v1804 = vshll.u32 %v1684, 16
        %v1806 = vrot.slane %v1804, 5
        %v1807 = vsel %vm245, %v1802, %v1806
        %v1808 = vshrl.u32 %v1684, 16
        %v1810 = vrot.slane %v1808, 4
        %v1811 = vor.u32 %v1810, %v1806
        %v1812 = vrot.slane %v1811, 4
        %v1814 = vshll.u32 %v1685, 16
        %v1816 = vrot.slane %v1814, 5
        %v1817 = vsel %vm245, %v1812, %v1816
        %v1819 = vshrl.u32 %v1686, 16
        %v1821 = vrot.slane %v1819, 4
        %v1822 = vshll.u32 %v1686, 16
        %v1824 = vrot.slane %v1822, 5
        %v1825 = vor.u32 %v1821, %v1824
        %v1826 = vrot.slane %v1825, 4
        %v1828 = vshll.u32 %v1687, 16
        %v1830 = vrot.slane %v1828, 5
        %v1831 = vsel %vm245, %v1826, %v1830
        %v1832 = vshrl.u32 %v1687, 16
        %v1834 = vrot.slane %v1832, 4
        %v1835 = vor.u32 %v1834, %v1830
        %v1836 = vrot.slane %v1835, 4
        %v1838 = vshll.u32 %v1688, 16
        %v1840 = vrot.slane %v1838, 5
        %v1841 = vsel %vm245, %v1836, %v1840
        %v1843 = vshrl.u32 %v1689, 16
        %v1845 = vrot.slane %v1843, 4
        %v1846 = vshll.u32 %v1689, 16
        %v1848 = vrot.slane %v1846, 5
        %v1849 = vor.u32 %v1845, %v1848
        %v1850 = vrot.slane %v1849, 4
        %v1852 = vshll.u32 %v1690, 16
        %v1854 = vrot.slane %v1852, 5
        %v1855 = vsel %vm245, %v1850, %v1854
        %v1856 = vshrl.u32 %v1690, 16
        %v1858 = vrot.slane %v1856, 4
        %v1859 = vor.u32 %v1858, %v1854
        %v1860 = vrot.slane %v1859, 4
        %v1862 = vshll.u32 %v1691, 16
        %v1864 = vrot.slane %v1862, 5
        %v1865 = vsel %vm245, %v1860, %v1864
        %v1867 = vshrl.u32 %v1692, 16
        %v1869 = vrot.slane %v1867, 4
        %v1870 = vshll.u32 %v1692, 16
        %v1872 = vrot.slane %v1870, 5
        %v1873 = vor.u32 %v1869, %v1872
        %v1874 = vrot.slane %v1873, 4
        %v1876 = vshll.u32 %v1693, 16
        %v1878 = vrot.slane %v1876, 5
        %v1879 = vsel %vm245, %v1874, %v1878
        %v1880 = vshrl.u32 %v1693, 16
        %v1882 = vrot.slane %v1880, 4
        %v1883 = vor.u32 %v1882, %v1878
        %v1884 = vrot.slane %v1883, 4
        %v1886 = vshll.u32 %v1694, 16
        %v1888 = vrot.slane %v1886, 5
        %v1889 = vsel %vm245, %v1884, %v1888
        %v1891 = vshrl.u32 %v1695, 16
        %v1893 = vrot.slane %v1891, 4
        %v1894 = vshll.u32 %v1695, 16
        %v1896 = vrot.slane %v1894, 5
        %v1897 = vor.u32 %v1893, %v1896
        %v1898 = vrot.slane %v1897, 4
        %v1900 = vshll.u32 %v1696, 16
        %v1902 = vrot.slane %v1900, 5
        %v1903 = vsel %vm245, %v1898, %v1902
        %v1904 = vshrl.u32 %v1696, 16
        %v1906 = vrot.slane %v1904, 4
        %v1907 = vor.u32 %v1906, %v1902
        %v1908 = vrot.slane %v1907, 4
        %v1910 = vshll.u32 %v1697, 16
        %v1912 = vrot.slane %v1910, 5
        %v1913 = vsel %vm245, %v1908, %v1912
        %s1914 = scalar_lea.vmem %s210, 20
        %v1915 = vld [vmem:[%s1914] sm:$0xf]
        %v1916 = vunpack.c.l.b16 %v1711
        %v1917 = vunpack.c.l.b16 %v1721
        %v1918 = vunpack.c.l.b16 %v1735
        %v1919 = vunpack.c.l.b16 %v1745
        %v1920 = vunpack.c.l.b16 %v1759
        %v1921 = vunpack.c.l.b16 %v1769
        %v1922 = vunpack.c.l.b16 %v1783
        %v1923 = vunpack.c.l.b16 %v1793
        %v1924 = vunpack.c.l.b16 %v1807
        %v1925 = vunpack.c.l.b16 %v1817
        %v1926 = vunpack.c.l.b16 %v1831
        %v1927 = vunpack.c.l.b16 %v1841
        %v1928 = vunpack.c.l.b16 %v1855
        %v1929 = vunpack.c.l.b16 %v1865
        %v1930 = vunpack.c.l.b16 %v1879
        %v1931 = vunpack.c.l.b16 %v1889
        %v1932 = vunpack.c.l.b16 %v1903
        %v1933 = vunpack.c.l.b16 %v1913
        %v1934 = vpack.c.b16 %v1917, %v1916
        %v1935 = vpack.c.b16 %v1919, %v1918
        %v1936 = vpack.c.b16 %v1921, %v1920
        %v1937 = vpack.c.b16 %v1923, %v1922
        %v1938 = vpack.c.b16 %v1925, %v1924
        %v1939 = vpack.c.b16 %v1927, %v1926
        %v1940 = vpack.c.b16 %v1929, %v1928
        %v1941 = vpack.c.b16 %v1931, %v1930
        %v1942 = vpack.c.b16 %v1933, %v1932
        %v1944 = vsel %vm491, %v1934, 0
        %v1947 = vsel %vm491, %v1935, 0
        %v1950 = vsel %vm491, %v1936, 0
        %v1953 = vsel %vm491, %v1937, 0
        %v1956 = vsel %vm491, %v1938, 0
        %v1959 = vsel %vm491, %v1939, 0
        %v1962 = vsel %vm491, %v1940, 0
        %v1965 = vsel %vm491, %v1941, 0
        %v1968 = vsel %vm491, %v1942, 0
        %v1971 = vsel %vm519, %v1915, 0
        %1973 = vmatprep.subr.bf16.mxu0 0
        %1974 = vmatpush1.bf16.msra.mxu0 %v1971
        %1975 = vmatprep.subr.bf16.mxu0 0
        %1976 = vmatpush1.bf16.msra.mxu0 0
        %1977 = vmatprep.subr.bf16.mxu0 0
        %1978 = vmatpush1.bf16.msra.mxu0 0
        %1979 = vmatprep.subr.bf16.mxu0 0
        %1980 = vmatpush1.bf16.msra.mxu0 0
        %1981 = vmatprep.subr.bf16.mxu0 0
        %1982 = vmatpush1.bf16.msra.mxu0 0
        %1983 = vmatprep.subr.bf16.mxu0 0
        %1984 = vmatpush1.bf16.msra.mxu0 0
        %1985 = vmatprep.subr.bf16.mxu0 0
        %1986 = vmatpush1.bf16.msra.mxu0 0
        %1987 = vmatprep.subr.bf16.mxu0 0
        %1988 = vmatpush1.bf16.msra.mxu0 0
        %1989 = vmatprep.subr.bf16.mxu0 0
        %1990 = vmatpush1.bf16.msra.mxu0 0
        %1991 = vmatprep.subr.bf16.mxu0 0
        %1992 = vmatpush1.bf16.msra.mxu0 0
        %1993 = vmatprep.subr.bf16.mxu0 0
        %1994 = vmatpush1.bf16.msra.mxu0 0
        %1995 = vmatprep.subr.bf16.mxu0 0
        %1996 = vmatpush1.bf16.msra.mxu0 0
        %1997 = vmatprep.subr.bf16.mxu0 0
        %1998 = vmatpush1.bf16.msra.mxu0 0
        %1999 = vmatprep.subr.bf16.mxu0 0
        %2000 = vmatpush1.bf16.msra.mxu0 0
        %2001 = vmatprep.subr.bf16.mxu0 0
        %2002 = vmatpush1.bf16.msra.mxu0 0
        %2003 = vmatprep.subr.bf16.mxu0 0
        %2004 = vmatpush1.bf16.msra.mxu0 0
        %2005 = vmatprep.mubr.bf16.mxu0 0
        %2006 = vmatmul.mubr.bf16.gmra.mrb[0].mxu0 %v1944
        %v2007 = vpop.f32.mrb[0].mxu0
        %v2008 = vadd.f32 0.0, %v2007
        %v2009 = vpop.f32.mrb[0].mxu0
        %v2010 = vpop.f32.mrb[0].mxu0
        %v2011 = vadd.f32 0.0, %v2010
        %v2012 = vpop.f32.mrb[0].mxu0
        %2013 = vmatprep.mubr.bf16.mxu0 0
        %2014 = vmatmul.mubr.bf16.gmra.mrb[0].mxu0 %v1947
        %v2015 = vpop.f32.mrb[0].mxu0
        %v2016 = vadd.f32 0.0, %v2015
        %v2017 = vpop.f32.mrb[0].mxu0
        %v2018 = vpop.f32.mrb[0].mxu0
        %v2019 = vadd.f32 0.0, %v2018
        %v2020 = vpop.f32.mrb[0].mxu0
        %2021 = vmatprep.mubr.bf16.mxu0 0
        %2022 = vmatmul.mubr.bf16.gmra.mrb[0].mxu0 %v1950
        %v2023 = vpop.f32.mrb[0].mxu0
        %v2024 = vadd.f32 0.0, %v2023
        %v2025 = vpop.f32.mrb[0].mxu0
        %v2026 = vpop.f32.mrb[0].mxu0
        %v2027 = vadd.f32 0.0, %v2026
        %v2028 = vpop.f32.mrb[0].mxu0
        %2029 = vmatprep.mubr.bf16.mxu0 0
        %2030 = vmatmul.mubr.bf16.gmra.mrb[0].mxu0 %v1953
        %v2031 = vpop.f32.mrb[0].mxu0
        %v2032 = vadd.f32 0.0, %v2031
        %v2033 = vpop.f32.mrb[0].mxu0
        %v2034 = vpop.f32.mrb[0].mxu0
        %v2035 = vadd.f32 0.0, %v2034
        %v2036 = vpop.f32.mrb[0].mxu0
        %2037 = vmatprep.mubr.bf16.mxu0 0
        %2038 = vmatmul.mubr.bf16.gmra.mrb[0].mxu0 %v1956
        %v2039 = vpop.f32.mrb[0].mxu0
        %v2040 = vadd.f32 0.0, %v2039
        %v2041 = vpop.f32.mrb[0].mxu0
        %v2042 = vpop.f32.mrb[0].mxu0
        %v2043 = vadd.f32 0.0, %v2042
        %v2044 = vpop.f32.mrb[0].mxu0
        %2045 = vmatprep.mubr.bf16.mxu0 0
        %2046 = vmatmul.mubr.bf16.gmra.mrb[0].mxu0 %v1959
        %v2047 = vpop.f32.mrb[0].mxu0
        %v2048 = vadd.f32 0.0, %v2047
        %v2049 = vpop.f32.mrb[0].mxu0
        %v2050 = vpop.f32.mrb[0].mxu0
        %v2051 = vadd.f32 0.0, %v2050
        %v2052 = vpop.f32.mrb[0].mxu0
        %2053 = vmatprep.mubr.bf16.mxu0 0
        %2054 = vmatmul.mubr.bf16.gmra.mrb[0].mxu0 %v1962
        %v2055 = vpop.f32.mrb[0].mxu0
        %v2056 = vadd.f32 0.0, %v2055
        %v2057 = vpop.f32.mrb[0].mxu0
        %v2058 = vpop.f32.mrb[0].mxu0
        %v2059 = vadd.f32 0.0, %v2058
        %v2060 = vpop.f32.mrb[0].mxu0
        %2061 = vmatprep.mubr.bf16.mxu0 0
        %2062 = vmatmul.mubr.bf16.gmra.mrb[0].mxu0 %v1965
        %v2063 = vpop.f32.mrb[0].mxu0
        %v2064 = vadd.f32 0.0, %v2063
        %v2065 = vpop.f32.mrb[0].mxu0
        %v2066 = vpop.f32.mrb[0].mxu0
        %v2067 = vadd.f32 0.0, %v2066
        %v2068 = vpop.f32.mrb[0].mxu0
        %2069 = vmatprep.mubr.bf16.mxu0 0
        %2070 = vmatmul.mubr.bf16.gmra.mrb[0].mxu0 %v1968
        %v2071 = vpop.f32.mrb[0].mxu0
        %v2072 = vadd.f32 0.0, %v2071
        %v2073 = vpop.f32.mrb[0].mxu0
        %v2074 = vpop.f32.mrb[0].mxu0
        %v2075 = vadd.f32 0.0, %v2074
        %v2076 = vpop.f32.mrb[0].mxu0
        %2077 = vdwg.mxu0
        %v2078 = vadd.f32 %v1653, %v2008
        %v2079 = vadd.f32 %v1654, %v2011
        %v2080 = vadd.f32 %v1655, %v2016
        %v2081 = vadd.f32 %v1656, %v2019
        %v2082 = vadd.f32 %v1657, %v2024
        %v2083 = vadd.f32 %v1658, %v2027
        %v2084 = vadd.f32 %v1659, %v2032
        %v2085 = vadd.f32 %v1660, %v2035
        %v2086 = vadd.f32 %v1661, %v2040
        %v2087 = vadd.f32 %v1662, %v2043
        %v2088 = vadd.f32 %v1663, %v2048
        %v2089 = vadd.f32 %v1664, %v2051
        %v2090 = vadd.f32 %v1665, %v2056
        %v2091 = vadd.f32 %v1666, %v2059
        %v2092 = vadd.f32 %v1667, %v2064
        %v2093 = vadd.f32 %v1668, %v2067
        %v2094 = vadd.f32 %v1669, %v2072
        %v2095 = vadd.f32 %v1670, %v2075
        %s2096 = scalar_lea.vmem %s206, 36
        %v2097 = vld [vmem:[%s2096] sm:$0xf]
        %v2098 = vld [vmem:[%s2096 + $0x4] sm:$0xf]
        %v2099 = vld [vmem:[%s2096 + $0x18] sm:$0xf]
        %v2100 = vld [vmem:[%s2096 + $0x1c] sm:$0xf]
        %v2101 = vld [vmem:[%s2096 + $0x30] sm:$0xf]
        %v2102 = vld [vmem:[%s2096 + $0x34] sm:$0xf]
        %v2103 = vld [vmem:[%s2096 + $0x48] sm:$0xf]
        %v2104 = vld [vmem:[%s2096 + $0x4c] sm:$0xf]
        %v2105 = vld [vmem:[%s2096 + $0x60] sm:$0xf]
        %v2106 = vld [vmem:[%s2096 + $0x64] sm:$0xf]
        %v2107 = vld [vmem:[%s2096 + $0x78] sm:$0xf]
        %v2108 = vld [vmem:[%s2096 + $0x7c] sm:$0xf]
        %v2109 = vld [vmem:[%s2096 + $0x90] sm:$0xf]
        %v2110 = vld [vmem:[%s2096 + $0x94] sm:$0xf]
        %v2111 = vld [vmem:[%s2096 + $0xa8] sm:$0xf]
        %v2112 = vld [vmem:[%s2096 + $0xac] sm:$0xf]
        %v2113 = vld [vmem:[%s2096 + $0xc0] sm:$0xf]
        %v2114 = vld [vmem:[%s2096 + $0xc4] sm:$0xf]
        %s2115 = scalar_lea.vmem %s210, 24
        %v2116 = vld [vmem:[%s2115] sm:$0xf]
        %v2135 = vunpack.c.l.b16 %v2097
        %v2136 = vunpack.c.l.b16 %v2098
        %v2137 = vunpack.c.l.b16 %v2099
        %v2138 = vunpack.c.l.b16 %v2100
        %v2139 = vunpack.c.l.b16 %v2101
        %v2140 = vunpack.c.l.b16 %v2102
        %v2141 = vunpack.c.l.b16 %v2103
        %v2142 = vunpack.c.l.b16 %v2104
        %v2143 = vunpack.c.l.b16 %v2105
        %v2144 = vunpack.c.l.b16 %v2106
        %v2145 = vunpack.c.l.b16 %v2107
        %v2146 = vunpack.c.l.b16 %v2108
        %v2147 = vunpack.c.l.b16 %v2109
        %v2148 = vunpack.c.l.b16 %v2110
        %v2149 = vunpack.c.l.b16 %v2111
        %v2150 = vunpack.c.l.b16 %v2112
        %v2151 = vunpack.c.l.b16 %v2113
        %v2152 = vunpack.c.l.b16 %v2114
        %v2153 = vpack.c.b16 %v2136, %v2135
        %v2154 = vpack.c.b16 %v2138, %v2137
        %v2155 = vpack.c.b16 %v2140, %v2139
        %v2156 = vpack.c.b16 %v2142, %v2141
        %v2157 = vpack.c.b16 %v2144, %v2143
        %v2158 = vpack.c.b16 %v2146, %v2145
        %v2159 = vpack.c.b16 %v2148, %v2147
        %v2160 = vpack.c.b16 %v2150, %v2149
        %v2161 = vpack.c.b16 %v2152, %v2151
        %v2163 = vsel %vm491, %v2153, 0
        %v2166 = vsel %vm491, %v2154, 0
        %v2169 = vsel %vm491, %v2155, 0
        %v2172 = vsel %vm491, %v2156, 0
        %v2175 = vsel %vm491, %v2157, 0
        %v2178 = vsel %vm491, %v2158, 0
        %v2181 = vsel %vm491, %v2159, 0
        %v2184 = vsel %vm491, %v2160, 0
        %v2187 = vsel %vm491, %v2161, 0
        %v2190 = vsel %vm519, %v2116, 0
        %2192 = vmatprep.subr.bf16.mxu0 0
        %2193 = vmatpush1.bf16.msra.mxu0 %v2190
        %2194 = vmatprep.subr.bf16.mxu0 0
        %2195 = vmatpush1.bf16.msra.mxu0 0
        %2196 = vmatprep.subr.bf16.mxu0 0
        %2197 = vmatpush1.bf16.msra.mxu0 0
        %2198 = vmatprep.subr.bf16.mxu0 0
        %2199 = vmatpush1.bf16.msra.mxu0 0
        %2200 = vmatprep.subr.bf16.mxu0 0
        %2201 = vmatpush1.bf16.msra.mxu0 0
        %2202 = vmatprep.subr.bf16.mxu0 0
        %2203 = vmatpush1.bf16.msra.mxu0 0
        %2204 = vmatprep.subr.bf16.mxu0 0
        %2205 = vmatpush1.bf16.msra.mxu0 0
        %2206 = vmatprep.subr.bf16.mxu0 0
        %2207 = vmatpush1.bf16.msra.mxu0 0
        %2208 = vmatprep.subr.bf16.mxu0 0
        %2209 = vmatpush1.bf16.msra.mxu0 0
        %2210 = vmatprep.subr.bf16.mxu0 0
        %2211 = vmatpush1.bf16.msra.mxu0 0
        %2212 = vmatprep.subr.bf16.mxu0 0
        %2213 = vmatpush1.bf16.msra.mxu0 0
        %2214 = vmatprep.subr.bf16.mxu0 0
        %2215 = vmatpush1.bf16.msra.mxu0 0
        %2216 = vmatprep.subr.bf16.mxu0 0
        %2217 = vmatpush1.bf16.msra.mxu0 0
        %2218 = vmatprep.subr.bf16.mxu0 0
        %2219 = vmatpush1.bf16.msra.mxu0 0
        %2220 = vmatprep.subr.bf16.mxu0 0
        %2221 = vmatpush1.bf16.msra.mxu0 0
        %2222 = vmatprep.subr.bf16.mxu0 0
        %2223 = vmatpush1.bf16.msra.mxu0 0
        %2224 = vmatprep.mubr.bf16.mxu0 0
        %2225 = vmatmul.mubr.bf16.gmra.mrb[0].mxu0 %v2163
        %v2226 = vpop.f32.mrb[0].mxu0
        %v2227 = vadd.f32 0.0, %v2226
        %v2228 = vpop.f32.mrb[0].mxu0
        %v2229 = vpop.f32.mrb[0].mxu0
        %v2230 = vadd.f32 0.0, %v2229
        %v2231 = vpop.f32.mrb[0].mxu0
        %2232 = vmatprep.mubr.bf16.mxu0 0
        %2233 = vmatmul.mubr.bf16.gmra.mrb[0].mxu0 %v2166
        %v2234 = vpop.f32.mrb[0].mxu0
        %v2235 = vadd.f32 0.0, %v2234
        %v2236 = vpop.f32.mrb[0].mxu0
        %v2237 = vpop.f32.mrb[0].mxu0
        %v2238 = vadd.f32 0.0, %v2237
        %v2239 = vpop.f32.mrb[0].mxu0
        %2240 = vmatprep.mubr.bf16.mxu0 0
        %2241 = vmatmul.mubr.bf16.gmra.mrb[0].mxu0 %v2169
        %v2242 = vpop.f32.mrb[0].mxu0
        %v2243 = vadd.f32 0.0, %v2242
        %v2244 = vpop.f32.mrb[0].mxu0
        %v2245 = vpop.f32.mrb[0].mxu0
        %v2246 = vadd.f32 0.0, %v2245
        %v2247 = vpop.f32.mrb[0].mxu0
        %2248 = vmatprep.mubr.bf16.mxu0 0
        %2249 = vmatmul.mubr.bf16.gmra.mrb[0].mxu0 %v2172
        %v2250 = vpop.f32.mrb[0].mxu0
        %v2251 = vadd.f32 0.0, %v2250
        %v2252 = vpop.f32.mrb[0].mxu0
        %v2253 = vpop.f32.mrb[0].mxu0
        %v2254 = vadd.f32 0.0, %v2253
        %v2255 = vpop.f32.mrb[0].mxu0
        %2256 = vmatprep.mubr.bf16.mxu0 0
        %2257 = vmatmul.mubr.bf16.gmra.mrb[0].mxu0 %v2175
        %v2258 = vpop.f32.mrb[0].mxu0
        %v2259 = vadd.f32 0.0, %v2258
        %v2260 = vpop.f32.mrb[0].mxu0
        %v2261 = vpop.f32.mrb[0].mxu0
        %v2262 = vadd.f32 0.0, %v2261
        %v2263 = vpop.f32.mrb[0].mxu0
        %2264 = vmatprep.mubr.bf16.mxu0 0
        %2265 = vmatmul.mubr.bf16.gmra.mrb[0].mxu0 %v2178
        %v2266 = vpop.f32.mrb[0].mxu0
        %v2267 = vadd.f32 0.0, %v2266
        %v2268 = vpop.f32.mrb[0].mxu0
        %v2269 = vpop.f32.mrb[0].mxu0
        %v2270 = vadd.f32 0.0, %v2269
        %v2271 = vpop.f32.mrb[0].mxu0
        %2272 = vmatprep.mubr.bf16.mxu0 0
        %2273 = vmatmul.mubr.bf16.gmra.mrb[0].mxu0 %v2181
        %v2274 = vpop.f32.mrb[0].mxu0
        %v2275 = vadd.f32 0.0, %v2274
        %v2276 = vpop.f32.mrb[0].mxu0
        %v2277 = vpop.f32.mrb[0].mxu0
        %v2278 = vadd.f32 0.0, %v2277
        %v2279 = vpop.f32.mrb[0].mxu0
        %2280 = vmatprep.mubr.bf16.mxu0 0
        %2281 = vmatmul.mubr.bf16.gmra.mrb[0].mxu0 %v2184
        %v2282 = vpop.f32.mrb[0].mxu0
        %v2283 = vadd.f32 0.0, %v2282
        %v2284 = vpop.f32.mrb[0].mxu0
        %v2285 = vpop.f32.mrb[0].mxu0
        %v2286 = vadd.f32 0.0, %v2285
        %v2287 = vpop.f32.mrb[0].mxu0
        %2288 = vmatprep.mubr.bf16.mxu0 0
        %2289 = vmatmul.mubr.bf16.gmra.mrb[0].mxu0 %v2187
        %v2290 = vpop.f32.mrb[0].mxu0
        %v2291 = vadd.f32 0.0, %v2290
        %v2292 = vpop.f32.mrb[0].mxu0
        %v2293 = vpop.f32.mrb[0].mxu0
        %v2294 = vadd.f32 0.0, %v2293
        %v2295 = vpop.f32.mrb[0].mxu0
        %2296 = vdwg.mxu0
        %v2297 = vadd.f32 %v2078, %v2227
        %v2298 = vadd.f32 %v2079, %v2230
        %v2299 = vadd.f32 %v2080, %v2235
        %v2300 = vadd.f32 %v2081, %v2238
        %v2301 = vadd.f32 %v2082, %v2243
        %v2302 = vadd.f32 %v2083, %v2246
        %v2303 = vadd.f32 %v2084, %v2251
        %v2304 = vadd.f32 %v2085, %v2254
        %v2305 = vadd.f32 %v2086, %v2259
        %v2306 = vadd.f32 %v2087, %v2262
        %v2307 = vadd.f32 %v2088, %v2267
        %v2308 = vadd.f32 %v2089, %v2270
        %v2309 = vadd.f32 %v2090, %v2275
        %v2310 = vadd.f32 %v2091, %v2278
        %v2311 = vadd.f32 %v2092, %v2283
        %v2312 = vadd.f32 %v2093, %v2286
        %v2313 = vadd.f32 %v2094, %v2291
        %v2314 = vadd.f32 %v2095, %v2294
        %v2315 = vld [vmem:[%s2096] sm:$0xf]
        %v2316 = vld [vmem:[%s2096 + $0x4] sm:$0xf]
        %v2317 = vld [vmem:[%s2096 + $0x8] sm:$0x1]
        %v2318 = vld [vmem:[%s2096 + $0x18] sm:$0xf]
        %v2319 = vld [vmem:[%s2096 + $0x1c] sm:$0xf]
        %v2320 = vld [vmem:[%s2096 + $0x20] sm:$0x1]
        %v2321 = vld [vmem:[%s2096 + $0x30] sm:$0xf]
        %v2322 = vld [vmem:[%s2096 + $0x34] sm:$0xf]
        %v2323 = vld [vmem:[%s2096 + $0x38] sm:$0x1]
        %v2324 = vld [vmem:[%s2096 + $0x48] sm:$0xf]
        %v2325 = vld [vmem:[%s2096 + $0x4c] sm:$0xf]
        %v2326 = vld [vmem:[%s2096 + $0x50] sm:$0x1]
        %v2327 = vld [vmem:[%s2096 + $0x60] sm:$0xf]
        %v2328 = vld [vmem:[%s2096 + $0x64] sm:$0xf]
        %v2329 = vld [vmem:[%s2096 + $0x68] sm:$0x1]
        %v2330 = vld [vmem:[%s2096 + $0x78] sm:$0xf]
        %v2331 = vld [vmem:[%s2096 + $0x7c] sm:$0xf]
        %v2332 = vld [vmem:[%s2096 + $0x80] sm:$0x1]
        %v2333 = vld [vmem:[%s2096 + $0x90] sm:$0xf]
        %v2334 = vld [vmem:[%s2096 + $0x94] sm:$0xf]
        %v2335 = vld [vmem:[%s2096 + $0x98] sm:$0x1]
        %v2336 = vld [vmem:[%s2096 + $0xa8] sm:$0xf]
        %v2337 = vld [vmem:[%s2096 + $0xac] sm:$0xf]
        %v2338 = vld [vmem:[%s2096 + $0xb0] sm:$0x1]
        %v2339 = vld [vmem:[%s2096 + $0xc0] sm:$0xf]
        %v2340 = vld [vmem:[%s2096 + $0xc4] sm:$0xf]
        %v2341 = vld [vmem:[%s2096 + $0xc8] sm:$0x1]
        %v2343 = vshrl.u32 %v2315, 16
        %v2345 = vrot.slane %v2343, 4
        %v2346 = vshll.u32 %v2315, 16
        %v2348 = vrot.slane %v2346, 5
        %v2349 = vor.u32 %v2345, %v2348
        %v2350 = vrot.slane %v2349, 4
        %v2352 = vshll.u32 %v2316, 16
        %v2354 = vrot.slane %v2352, 5
        %v2355 = vsel %vm245, %v2350, %v2354
        %v2356 = vshrl.u32 %v2316, 16
        %v2358 = vrot.slane %v2356, 4
        %v2359 = vor.u32 %v2358, %v2354
        %v2360 = vrot.slane %v2359, 4
        %v2362 = vshll.u32 %v2317, 16
        %v2364 = vrot.slane %v2362, 5
        %v2365 = vsel %vm245, %v2360, %v2364
        %v2367 = vshrl.u32 %v2318, 16
        %v2369 = vrot.slane %v2367, 4
        %v2370 = vshll.u32 %v2318, 16
        %v2372 = vrot.slane %v2370, 5
        %v2373 = vor.u32 %v2369, %v2372
        %v2374 = vrot.slane %v2373, 4
        %v2376 = vshll.u32 %v2319, 16
        %v2378 = vrot.slane %v2376, 5
        %v2379 = vsel %vm245, %v2374, %v2378
        %v2380 = vshrl.u32 %v2319, 16
        %v2382 = vrot.slane %v2380, 4
        %v2383 = vor.u32 %v2382, %v2378
        %v2384 = vrot.slane %v2383, 4
        %v2386 = vshll.u32 %v2320, 16
        %v2388 = vrot.slane %v2386, 5
        %v2389 = vsel %vm245, %v2384, %v2388
        %v2391 = vshrl.u32 %v2321, 16
        %v2393 = vrot.slane %v2391, 4
        %v2394 = vshll.u32 %v2321, 16
        %v2396 = vrot.slane %v2394, 5
        %v2397 = vor.u32 %v2393, %v2396
        %v2398 = vrot.slane %v2397, 4
        %v2400 = vshll.u32 %v2322, 16
        %v2402 = vrot.slane %v2400, 5
        %v2403 = vsel %vm245, %v2398, %v2402
        %v2404 = vshrl.u32 %v2322, 16
        %v2406 = vrot.slane %v2404, 4
        %v2407 = vor.u32 %v2406, %v2402
        %v2408 = vrot.slane %v2407, 4
        %v2410 = vshll.u32 %v2323, 16
        %v2412 = vrot.slane %v2410, 5
        %v2413 = vsel %vm245, %v2408, %v2412
        %v2415 = vshrl.u32 %v2324, 16
        %v2417 = vrot.slane %v2415, 4
        %v2418 = vshll.u32 %v2324, 16
        %v2420 = vrot.slane %v2418, 5
        %v2421 = vor.u32 %v2417, %v2420
        %v2422 = vrot.slane %v2421, 4
        %v2424 = vshll.u32 %v2325, 16
        %v2426 = vrot.slane %v2424, 5
        %v2427 = vsel %vm245, %v2422, %v2426
        %v2428 = vshrl.u32 %v2325, 16
        %v2430 = vrot.slane %v2428, 4
        %v2431 = vor.u32 %v2430, %v2426
        %v2432 = vrot.slane %v2431, 4
        %v2434 = vshll.u32 %v2326, 16
        %v2436 = vrot.slane %v2434, 5
        %v2437 = vsel %vm245, %v2432, %v2436
        %v2439 = vshrl.u32 %v2327, 16
        %v2441 = vrot.slane %v2439, 4
        %v2442 = vshll.u32 %v2327, 16
        %v2444 = vrot.slane %v2442, 5
        %v2445 = vor.u32 %v2441, %v2444
        %v2446 = vrot.slane %v2445, 4
        %v2448 = vshll.u32 %v2328, 16
        %v2450 = vrot.slane %v2448, 5
        %v2451 = vsel %vm245, %v2446, %v2450
        %v2452 = vshrl.u32 %v2328, 16
        %v2454 = vrot.slane %v2452, 4
        %v2455 = vor.u32 %v2454, %v2450
        %v2456 = vrot.slane %v2455, 4
        %v2458 = vshll.u32 %v2329, 16
        %v2460 = vrot.slane %v2458, 5
        %v2461 = vsel %vm245, %v2456, %v2460
        %v2463 = vshrl.u32 %v2330, 16
        %v2465 = vrot.slane %v2463, 4
        %v2466 = vshll.u32 %v2330, 16
        %v2468 = vrot.slane %v2466, 5
        %v2469 = vor.u32 %v2465, %v2468
        %v2470 = vrot.slane %v2469, 4
        %v2472 = vshll.u32 %v2331, 16
        %v2474 = vrot.slane %v2472, 5
        %v2475 = vsel %vm245, %v2470, %v2474
        %v2476 = vshrl.u32 %v2331, 16
        %v2478 = vrot.slane %v2476, 4
        %v2479 = vor.u32 %v2478, %v2474
        %v2480 = vrot.slane %v2479, 4
        %v2482 = vshll.u32 %v2332, 16
        %v2484 = vrot.slane %v2482, 5
        %v2485 = vsel %vm245, %v2480, %v2484
        %v2487 = vshrl.u32 %v2333, 16
        %v2489 = vrot.slane %v2487, 4
        %v2490 = vshll.u32 %v2333, 16
        %v2492 = vrot.slane %v2490, 5
        %v2493 = vor.u32 %v2489, %v2492
        %v2494 = vrot.slane %v2493, 4
        %v2496 = vshll.u32 %v2334, 16
        %v2498 = vrot.slane %v2496, 5
        %v2499 = vsel %vm245, %v2494, %v2498
        %v2500 = vshrl.u32 %v2334, 16
        %v2502 = vrot.slane %v2500, 4
        %v2503 = vor.u32 %v2502, %v2498
        %v2504 = vrot.slane %v2503, 4
        %v2506 = vshll.u32 %v2335, 16
        %v2508 = vrot.slane %v2506, 5
        %v2509 = vsel %vm245, %v2504, %v2508
        %v2511 = vshrl.u32 %v2336, 16
        %v2513 = vrot.slane %v2511, 4
        %v2514 = vshll.u32 %v2336, 16
        %v2516 = vrot.slane %v2514, 5
        %v2517 = vor.u32 %v2513, %v2516
        %v2518 = vrot.slane %v2517, 4
        %v2520 = vshll.u32 %v2337, 16
        %v2522 = vrot.slane %v2520, 5
        %v2523 = vsel %vm245, %v2518, %v2522
        %v2524 = vshrl.u32 %v2337, 16
        %v2526 = vrot.slane %v2524, 4
        %v2527 = vor.u32 %v2526, %v2522
        %v2528 = vrot.slane %v2527, 4
        %v2530 = vshll.u32 %v2338, 16
        %v2532 = vrot.slane %v2530, 5
        %v2533 = vsel %vm245, %v2528, %v2532
        %v2535 = vshrl.u32 %v2339, 16
        %v2537 = vrot.slane %v2535, 4
        %v2538 = vshll.u32 %v2339, 16
        %v2540 = vrot.slane %v2538, 5
        %v2541 = vor.u32 %v2537, %v2540
        %v2542 = vrot.slane %v2541, 4
        %v2544 = vshll.u32 %v2340, 16
        %v2546 = vrot.slane %v2544, 5
        %v2547 = vsel %vm245, %v2542, %v2546
        %v2548 = vshrl.u32 %v2340, 16
        %v2550 = vrot.slane %v2548, 4
        %v2551 = vor.u32 %v2550, %v2546
        %v2552 = vrot.slane %v2551, 4
        %v2554 = vshll.u32 %v2341, 16
        %v2556 = vrot.slane %v2554, 5
        %v2557 = vsel %vm245, %v2552, %v2556
        %s2558 = scalar_lea.vmem %s210, 28
        %v2559 = vld [vmem:[%s2558] sm:$0xf]
        %v2560 = vunpack.c.l.b16 %v2355
        %v2561 = vunpack.c.l.b16 %v2365
        %v2562 = vunpack.c.l.b16 %v2379
        %v2563 = vunpack.c.l.b16 %v2389
        %v2564 = vunpack.c.l.b16 %v2403
        %v2565 = vunpack.c.l.b16 %v2413
        %v2566 = vunpack.c.l.b16 %v2427
        %v2567 = vunpack.c.l.b16 %v2437
        %v2568 = vunpack.c.l.b16 %v2451
        %v2569 = vunpack.c.l.b16 %v2461
        %v2570 = vunpack.c.l.b16 %v2475
        %v2571 = vunpack.c.l.b16 %v2485
        %v2572 = vunpack.c.l.b16 %v2499
        %v2573 = vunpack.c.l.b16 %v2509
        %v2574 = vunpack.c.l.b16 %v2523
        %v2575 = vunpack.c.l.b16 %v2533
        %v2576 = vunpack.c.l.b16 %v2547
        %v2577 = vunpack.c.l.b16 %v2557
        %v2578 = vpack.c.b16 %v2561, %v2560
        %v2579 = vpack.c.b16 %v2563, %v2562
        %v2580 = vpack.c.b16 %v2565, %v2564
        %v2581 = vpack.c.b16 %v2567, %v2566
        %v2582 = vpack.c.b16 %v2569, %v2568
        %v2583 = vpack.c.b16 %v2571, %v2570
        %v2584 = vpack.c.b16 %v2573, %v2572
        %v2585 = vpack.c.b16 %v2575, %v2574
        %v2586 = vpack.c.b16 %v2577, %v2576
        %v2588 = vsel %vm491, %v2578, 0
        %v2591 = vsel %vm491, %v2579, 0
        %v2594 = vsel %vm491, %v2580, 0
        %v2597 = vsel %vm491, %v2581, 0
        %v2600 = vsel %vm491, %v2582, 0
        %v2603 = vsel %vm491, %v2583, 0
        %v2606 = vsel %vm491, %v2584, 0
        %v2609 = vsel %vm491, %v2585, 0
        %v2612 = vsel %vm491, %v2586, 0
        %v2615 = vsel %vm519, %v2559, 0
        %2617 = vmatprep.subr.bf16.mxu0 0
        %2618 = vmatpush1.bf16.msra.mxu0 %v2615
        %2619 = vmatprep.subr.bf16.mxu0 0
        %2620 = vmatpush1.bf16.msra.mxu0 0
        %2621 = vmatprep.subr.bf16.mxu0 0
        %2622 = vmatpush1.bf16.msra.mxu0 0
        %2623 = vmatprep.subr.bf16.mxu0 0
        %2624 = vmatpush1.bf16.msra.mxu0 0
        %2625 = vmatprep.subr.bf16.mxu0 0
        %2626 = vmatpush1.bf16.msra.mxu0 0
        %2627 = vmatprep.subr.bf16.mxu0 0
        %2628 = vmatpush1.bf16.msra.mxu0 0
        %2629 = vmatprep.subr.bf16.mxu0 0
        %2630 = vmatpush1.bf16.msra.mxu0 0
        %2631 = vmatprep.subr.bf16.mxu0 0
        %2632 = vmatpush1.bf16.msra.mxu0 0
        %2633 = vmatprep.subr.bf16.mxu0 0
        %2634 = vmatpush1.bf16.msra.mxu0 0
        %2635 = vmatprep.subr.bf16.mxu0 0
        %2636 = vmatpush1.bf16.msra.mxu0 0
        %2637 = vmatprep.subr.bf16.mxu0 0
        %2638 = vmatpush1.bf16.msra.mxu0 0
        %2639 = vmatprep.subr.bf16.mxu0 0
        %2640 = vmatpush1.bf16.msra.mxu0 0
        %2641 = vmatprep.subr.bf16.mxu0 0
        %2642 = vmatpush1.bf16.msra.mxu0 0
        %2643 = vmatprep.subr.bf16.mxu0 0
        %2644 = vmatpush1.bf16.msra.mxu0 0
        %2645 = vmatprep.subr.bf16.mxu0 0
        %2646 = vmatpush1.bf16.msra.mxu0 0
        %2647 = vmatprep.subr.bf16.mxu0 0
        %2648 = vmatpush1.bf16.msra.mxu0 0
        %2649 = vmatprep.mubr.bf16.mxu0 0
        %2650 = vmatmul.mubr.bf16.gmra.mrb[0].mxu0 %v2588
        %v2651 = vpop.f32.mrb[0].mxu0
        %v2652 = vadd.f32 0.0, %v2651
        %v2653 = vpop.f32.mrb[0].mxu0
        %v2654 = vpop.f32.mrb[0].mxu0
        %v2655 = vadd.f32 0.0, %v2654
        %v2656 = vpop.f32.mrb[0].mxu0
        %2657 = vmatprep.mubr.bf16.mxu0 0
        %2658 = vmatmul.mubr.bf16.gmra.mrb[0].mxu0 %v2591
        %v2659 = vpop.f32.mrb[0].mxu0
        %v2660 = vadd.f32 0.0, %v2659
        %v2661 = vpop.f32.mrb[0].mxu0
        %v2662 = vpop.f32.mrb[0].mxu0
        %v2663 = vadd.f32 0.0, %v2662
        %v2664 = vpop.f32.mrb[0].mxu0
        %2665 = vmatprep.mubr.bf16.mxu0 0
        %2666 = vmatmul.mubr.bf16.gmra.mrb[0].mxu0 %v2594
        %v2667 = vpop.f32.mrb[0].mxu0
        %v2668 = vadd.f32 0.0, %v2667
        %v2669 = vpop.f32.mrb[0].mxu0
        %v2670 = vpop.f32.mrb[0].mxu0
        %v2671 = vadd.f32 0.0, %v2670
        %v2672 = vpop.f32.mrb[0].mxu0
        %2673 = vmatprep.mubr.bf16.mxu0 0
        %2674 = vmatmul.mubr.bf16.gmra.mrb[0].mxu0 %v2597
        %v2675 = vpop.f32.mrb[0].mxu0
        %v2676 = vadd.f32 0.0, %v2675
        %v2677 = vpop.f32.mrb[0].mxu0
        %v2678 = vpop.f32.mrb[0].mxu0
        %v2679 = vadd.f32 0.0, %v2678
        %v2680 = vpop.f32.mrb[0].mxu0
        %2681 = vmatprep.mubr.bf16.mxu0 0
        %2682 = vmatmul.mubr.bf16.gmra.mrb[0].mxu0 %v2600
        %v2683 = vpop.f32.mrb[0].mxu0
        %v2684 = vadd.f32 0.0, %v2683
        %v2685 = vpop.f32.mrb[0].mxu0
        %v2686 = vpop.f32.mrb[0].mxu0
        %v2687 = vadd.f32 0.0, %v2686
        %v2688 = vpop.f32.mrb[0].mxu0
        %2689 = vmatprep.mubr.bf16.mxu0 0
        %2690 = vmatmul.mubr.bf16.gmra.mrb[0].mxu0 %v2603
        %v2691 = vpop.f32.mrb[0].mxu0
        %v2692 = vadd.f32 0.0, %v2691
        %v2693 = vpop.f32.mrb[0].mxu0
        %v2694 = vpop.f32.mrb[0].mxu0
        %v2695 = vadd.f32 0.0, %v2694
        %v2696 = vpop.f32.mrb[0].mxu0
        %2697 = vmatprep.mubr.bf16.mxu0 0
        %2698 = vmatmul.mubr.bf16.gmra.mrb[0].mxu0 %v2606
        %v2699 = vpop.f32.mrb[0].mxu0
        %v2700 = vadd.f32 0.0, %v2699
        %v2701 = vpop.f32.mrb[0].mxu0
        %v2702 = vpop.f32.mrb[0].mxu0
        %v2703 = vadd.f32 0.0, %v2702
        %v2704 = vpop.f32.mrb[0].mxu0
        %2705 = vmatprep.mubr.bf16.mxu0 0
        %2706 = vmatmul.mubr.bf16.gmra.mrb[0].mxu0 %v2609
        %v2707 = vpop.f32.mrb[0].mxu0
        %v2708 = vadd.f32 0.0, %v2707
        %v2709 = vpop.f32.mrb[0].mxu0
        %v2710 = vpop.f32.mrb[0].mxu0
        %v2711 = vadd.f32 0.0, %v2710
        %v2712 = vpop.f32.mrb[0].mxu0
        %2713 = vmatprep.mubr.bf16.mxu0 0
        %2714 = vmatmul.mubr.bf16.gmra.mrb[0].mxu0 %v2612
        %v2715 = vpop.f32.mrb[0].mxu0
        %v2716 = vadd.f32 0.0, %v2715
        %v2717 = vpop.f32.mrb[0].mxu0
        %v2718 = vpop.f32.mrb[0].mxu0
        %v2719 = vadd.f32 0.0, %v2718
        %v2720 = vpop.f32.mrb[0].mxu0
        %2721 = vdwg.mxu0
        %v2722 = vadd.f32 %v2297, %v2652
        %v2723 = vadd.f32 %v2298, %v2655
        %v2724 = vadd.f32 %v2299, %v2660
        %v2725 = vadd.f32 %v2300, %v2663
        %v2726 = vadd.f32 %v2301, %v2668
        %v2727 = vadd.f32 %v2302, %v2671
        %v2728 = vadd.f32 %v2303, %v2676
        %v2729 = vadd.f32 %v2304, %v2679
        %v2730 = vadd.f32 %v2305, %v2684
        %v2731 = vadd.f32 %v2306, %v2687
        %v2732 = vadd.f32 %v2307, %v2692
        %v2733 = vadd.f32 %v2308, %v2695
        %v2734 = vadd.f32 %v2309, %v2700
        %v2735 = vadd.f32 %v2310, %v2703
        %v2736 = vadd.f32 %v2311, %v2708
        %v2737 = vadd.f32 %v2312, %v2711
        %v2738 = vadd.f32 %v2313, %v2716
        %v2739 = vadd.f32 %v2314, %v2719
        %v2740 = vld [vmem:[%s213] sm:$0x1]
        %v2742 = vlaneseq
        %v2743 = vshrl.u32 %v2742, 7
        %v2744 = vsub.s32 0, %v2743
        %v2745 = vrot.slane %v2740, %v2744
        %v2747 = vadd.f32 %v2722, %v2745
        %v2748 = vadd.f32 %v2723, %v2745
        %v2749 = vadd.f32 %v2724, %v2745
        %v2750 = vadd.f32 %v2725, %v2745
        %v2751 = vadd.f32 %v2726, %v2745
        %v2752 = vadd.f32 %v2727, %v2745
        %v2753 = vadd.f32 %v2728, %v2745
        %v2754 = vadd.f32 %v2729, %v2745
        %v2755 = vadd.f32 %v2730, %v2745
        %v2756 = vadd.f32 %v2731, %v2745
        %v2757 = vadd.f32 %v2732, %v2745
        %v2758 = vadd.f32 %v2733, %v2745
        %v2759 = vadd.f32 %v2734, %v2745
        %v2760 = vadd.f32 %v2735, %v2745
        %v2761 = vadd.f32 %v2736, %v2745
        %v2762 = vadd.f32 %v2737, %v2745
        %v2763 = vadd.f32 %v2738, %v2745
        %v2764 = vadd.f32 %v2739, %v2745
        %vm2765 = vcmp.ge.f32.partialorder %v2747, 0.0
        %vm2766 = vcmp.ge.f32.partialorder %v2748, 0.0
        %vm2767 = vcmp.ge.f32.partialorder %v2749, 0.0
        %vm2768 = vcmp.ge.f32.partialorder %v2750, 0.0
        %vm2769 = vcmp.ge.f32.partialorder %v2751, 0.0
        %vm2770 = vcmp.ge.f32.partialorder %v2752, 0.0
        %vm2771 = vcmp.ge.f32.partialorder %v2753, 0.0
        %vm2772 = vcmp.ge.f32.partialorder %v2754, 0.0
        %vm2773 = vcmp.ge.f32.partialorder %v2755, 0.0
        %vm2774 = vcmp.ge.f32.partialorder %v2756, 0.0
        %vm2775 = vcmp.ge.f32.partialorder %v2757, 0.0
        %vm2776 = vcmp.ge.f32.partialorder %v2758, 0.0
        %vm2777 = vcmp.ge.f32.partialorder %v2759, 0.0
        %vm2778 = vcmp.ge.f32.partialorder %v2760, 0.0
        %vm2779 = vcmp.ge.f32.partialorder %v2761, 0.0
        %vm2780 = vcmp.ge.f32.partialorder %v2762, 0.0
        %vm2781 = vcmp.ge.f32.partialorder %v2763, 0.0
        %vm2782 = vcmp.ge.f32.partialorder %v2764, 0.0
        %v2783 = vmul.f32 %v2747, 0.2
        %v2784 = vmul.f32 %v2748, 0.2
        %v2785 = vmul.f32 %v2749, 0.2
        %v2786 = vmul.f32 %v2750, 0.2
        %v2787 = vmul.f32 %v2751, 0.2
        %v2788 = vmul.f32 %v2752, 0.2
        %v2789 = vmul.f32 %v2753, 0.2
        %v2790 = vmul.f32 %v2754, 0.2
        %v2791 = vmul.f32 %v2755, 0.2
        %v2792 = vmul.f32 %v2756, 0.2
        %v2793 = vmul.f32 %v2757, 0.2
        %v2794 = vmul.f32 %v2758, 0.2
        %v2795 = vmul.f32 %v2759, 0.2
        %v2796 = vmul.f32 %v2760, 0.2
        %v2797 = vmul.f32 %v2761, 0.2
        %v2798 = vmul.f32 %v2762, 0.2
        %v2799 = vmul.f32 %v2763, 0.2
        %v2800 = vmul.f32 %v2764, 0.2
        %v2801 = vsel %vm2765, %v2747, %v2783
        %v2802 = vsel %vm2766, %v2748, %v2784
        %v2803 = vsel %vm2767, %v2749, %v2785
        %v2804 = vsel %vm2768, %v2750, %v2786
        %v2805 = vsel %vm2769, %v2751, %v2787
        %v2806 = vsel %vm2770, %v2752, %v2788
        %v2807 = vsel %vm2771, %v2753, %v2789
        %v2808 = vsel %vm2772, %v2754, %v2790
        %v2809 = vsel %vm2773, %v2755, %v2791
        %v2810 = vsel %vm2774, %v2756, %v2792
        %v2811 = vsel %vm2775, %v2757, %v2793
        %v2812 = vsel %vm2776, %v2758, %v2794
        %v2813 = vsel %vm2777, %v2759, %v2795
        %v2814 = vsel %vm2778, %v2760, %v2796
        %v2815 = vsel %vm2779, %v2761, %v2797
        %v2816 = vsel %vm2780, %v2762, %v2798
        %v2817 = vsel %vm2781, %v2763, %v2799
        %v2818 = vsel %vm2782, %v2764, %v2800
        %v2819 = vpack.c.bf16 %v2802, %v2801
        %v2820 = vpack.c.bf16 %v2804, %v2803
        %v2821 = vpack.c.bf16 %v2806, %v2805
        %v2822 = vpack.c.bf16 %v2808, %v2807
        %v2823 = vpack.c.bf16 %v2810, %v2809
        %v2824 = vpack.c.bf16 %v2812, %v2811
        %v2825 = vpack.c.bf16 %v2814, %v2813
        %v2826 = vpack.c.bf16 %v2816, %v2815
        %v2827 = vpack.c.bf16 %v2818, %v2817
        %v2837 = vunpack.c.l.b16 %v2819
        %v2838 = vunpack.c.h.b16 %v2819
        %v2839 = vunpack.c.l.b16 %v2820
        %v2840 = vunpack.c.h.b16 %v2820
        %v2841 = vunpack.c.l.b16 %v2821
        %v2842 = vunpack.c.h.b16 %v2821
        %v2843 = vunpack.c.l.b16 %v2822
        %v2844 = vunpack.c.h.b16 %v2822
        %v2845 = vunpack.c.l.b16 %v2823
        %v2846 = vunpack.c.h.b16 %v2823
        %v2847 = vunpack.c.l.b16 %v2824
        %v2848 = vunpack.c.h.b16 %v2824
        %v2849 = vunpack.c.l.b16 %v2825
        %v2850 = vunpack.c.h.b16 %v2825
        %v2851 = vunpack.c.l.b16 %v2826
        %v2852 = vunpack.c.h.b16 %v2826
        %v2853 = vunpack.c.l.b16 %v2827
        %v2854 = vunpack.c.h.b16 %v2827
        %v2855 = vpack.c.b16 %v2837, %v2837
        %v2856 = vpack.c.b16 %v2838, %v2838
        %v2857 = vpack.c.b16 %v2839, %v2839
        %v2858 = vpack.c.b16 %v2840, %v2840
        %v2859 = vpack.c.b16 %v2841, %v2841
        %v2860 = vpack.c.b16 %v2842, %v2842
        %v2861 = vpack.c.b16 %v2843, %v2843
        %v2862 = vpack.c.b16 %v2844, %v2844
        %v2863 = vpack.c.b16 %v2845, %v2845
        %v2864 = vpack.c.b16 %v2846, %v2846
        %v2865 = vpack.c.b16 %v2847, %v2847
        %v2866 = vpack.c.b16 %v2848, %v2848
        %v2867 = vpack.c.b16 %v2849, %v2849
        %v2868 = vpack.c.b16 %v2850, %v2850
        %v2869 = vpack.c.b16 %v2851, %v2851
        %v2870 = vpack.c.b16 %v2852, %v2852
        %v2871 = vpack.c.b16 %v2853, %v2853
        %v2872 = vpack.c.b16 %v2854, %v2854
        %2891 = vst [vmem:[%s201] sm:$0xf] %v2855
        %2892 = vst [vmem:[%s201 + $0x4] sm:$0xf] %v2856
        %2893 = vst [vmem:[%s201 + $0x8] sm:$0xf] %v2857
        %2894 = vst [vmem:[%s201 + $0xc] sm:$0xf] %v2858
        %2895 = vst [vmem:[%s201 + $0x10] sm:$0xf] %v2859
        %2896 = vst [vmem:[%s201 + $0x14] sm:$0xf] %v2860
        %2897 = vst [vmem:[%s201 + $0x18] sm:$0xf] %v2861
        %2898 = vst [vmem:[%s201 + $0x1c] sm:$0xf] %v2862
        %2899 = vst [vmem:[%s201 + $0x20] sm:$0xf] %v2863
        %2900 = vst [vmem:[%s201 + $0x24] sm:$0xf] %v2864
        %2901 = vst [vmem:[%s201 + $0x28] sm:$0xf] %v2865
        %2902 = vst [vmem:[%s201 + $0x2c] sm:$0xf] %v2866
        %2903 = vst [vmem:[%s201 + $0x30] sm:$0xf] %v2867
        %2904 = vst [vmem:[%s201 + $0x34] sm:$0xf] %v2868
        %2905 = vst [vmem:[%s201 + $0x38] sm:$0xf] %v2869
        %2906 = vst [vmem:[%s201 + $0x3c] sm:$0xf] %v2870
        %2907 = vst [vmem:[%s201 + $0x40] sm:$0xf] %v2871
        %2908 = vst [vmem:[%s201 + $0x44] sm:$0xf] %v2872
        %s2909 = sand.u32 %s117, 1
        %s2910 = scalar_lea.sflag [#allocation3], %s2909
        %s2911 = sand.u32 %s117, 1
        %s2912 = smul.addr %s2911, 72
        %s2913 = scalar_lea.vmem [#allocation2], %s2912
        // Predicated region
        $region33: #{tpu_custom_call.1} parent=31 // pred_check
          %p2914 = pneg %p127
        $region34: #{tpu_custom_call.1} parent=31 // pred_check_branch
          %2916 = sbr.rel (%p2914) target = $region36
        $region35: #{tpu_custom_call.1} parent=31 // pred_region
          %s2918 = ssub.s32 1152, 1152
          %2919 = vsyncadd %s2910, %s2918
          %s2920 = smul.addr %s21, 18
          %s2921 = sadd.s32 %s22, %s2920
          %s2922 = smul.addr %s2921, 64
          %s2923 = scalar_lea.hbm %s3, %s2922
          %s2924 = sshll.u32 %s2913, 4
          %s2925 = int_to_ptr.vmem [resolvable:$true] %s2924
          %2930 = dma.vmem_to_hbm [thread:$0]  %s2925, 1152, %s2923, %s2910, 64, 64, 4
        $region36: #{tpu_custom_call.1} parent=31 // pred_fallthru
          _
      $region32: #{tpu_custom_call.1} parent=5 // pred_fallthru
        _
      %p2931 = scmp.le.s32.totalorder 2, %s12
      // Predicated region
      $region37: #{tpu_custom_call.1} parent=5 // pred_check
        %p2932 = pneg %p2931
      $region38: #{tpu_custom_call.1} parent=5 // pred_check_branch
        %2934 = sbr.rel (%p2932) target = $region40
      $region39: #{tpu_custom_call.1} parent=5 // pred_region
        %s2935 = ssub.s32 %s12, 2
        // Predicated region
        $region41: #{tpu_custom_call.1} parent=39 // pred_check
          %p2936 = pneg %p133
        $region42: #{tpu_custom_call.1} parent=39 // pred_check_branch
          %2938 = sbr.rel (%p2936) target = $region44
        $region43: #{tpu_custom_call.1} parent=39 // pred_region
          %s2939 = sand.u32 %s118, 1
          %s2940 = scalar_lea.sflag [#allocation3], %s2939
          %s2941 = sand.u32 %s118, 1
          %s2942 = smul.addr %s2941, 72
          %s2943 = scalar_lea.vmem [#allocation2], %s2942
          %2944 = dma.done %s2940, 1152
        $region44: #{tpu_custom_call.1} parent=39 // pred_fallthru
          _
      $region40: #{tpu_custom_call.1} parent=5 // pred_fallthru
        _
    $region6: #{tpu_custom_call.1} parent=1 // loop_footer
      %s16 = sadd.s32 1, %s12
    $region7: #{tpu_custom_call.1} parent=1 // loop_footer_branch
      %11 = sbr.rel target = $region3
    $region8: #{tpu_custom_call.1} parent=1 // loop_exit
      _
    %2945 = vsyncpa [#allocation3], 1
    %s2946 = scalar_lea.sflag [#allocation3], 1
    %2947 = vsyncpa %s2946, 1

</llo_original>
